<compile_context>
chip_gen: v7x
topology: tpu7x:2x2x1
jax: 0.10.0
libtpu: 0.0.40
codegen_flags: <defaults>
</compile_context>

<pallas_src>
import functools
from typing import NamedTuple, Optional

import jax
import jax.numpy as jnp
from jax.experimental import pallas as pl
from jax.experimental.pallas import tpu as pltpu


_LANES = 128
_MAX_HIDDEN_CHUNK = 2048        # lanes of packed hidden dim processed per grid step
_VMEM_TARGET_BYTES = 48 << 20   # stay under v7x 64 MiB physical / 32 MiB scoped default


def _round_up(n, m):
    return (n + m - 1) // m * m


class MLPParams(NamedTuple):
    w1: jax.Array       # (K1, N1p) bf16, block-diagonal packed, hidden zero-padded
    b1: jax.Array       # (1,  N1p) f32
    w2: jax.Array       # (N1p, N2) bf16
    b2: jax.Array       # (1,  N2)  f32
    n_embd: int         # C
    n_hidden: int       # H = 4*C (per token, unpadded)
    pack: int           # P tokens packed per 128-lane row
    hidden_chunk: int   # lanes of packed hidden per grid step
    num_hidden_chunks: int


def prepare_mlp_params(w1, b1, w2, b2) -> MLPParams:
    """Pack & cast the MLP parameters ONCE at parameter-prep time.

    w1: (C, H), b1: (H,), w2: (H, C), b2: (C,)  (weights are [in, out], i.e. the
    transpose of PyTorch's nn.Linear.weight storage).

    Lane-dense packing: with C < 128 only C of each vreg's 128 lanes would be used
    and output stores would lower to masked vst.msk.  We pack P = 128//C tokens per
    row and replicate the weights block-diagonally (kron with I_P) so both matmuls
    operate directly on the packed layout.  For C >= 128 this is a no-op.
    The packed hidden dim is zero-padded to a multiple of the hidden chunk, which
    keeps the in-kernel reduction over hidden chunks exact (GELU(0) = 0).
    """
    C, H = w1.shape
    assert w2.shape == (H, C) and b1.shape == (H,) and b2.shape == (C,)

    P = _LANES // C if (C < _LANES and _LANES % C == 0) else 1

    w1f, b1f = w1.astype(jnp.float32), b1.astype(jnp.float32)
    w2f, b2f = w2.astype(jnp.float32), b2.astype(jnp.float32)
    if P > 1:
        eye_p = jnp.eye(P, dtype=jnp.float32)
        w1f = jnp.kron(eye_p, w1f)                  # (P*C, P*H)
        w2f = jnp.kron(eye_p, w2f)                  # (P*H, P*C)
        b1f = jnp.tile(b1f.reshape(1, H), (1, P))   # (1, P*H)
        b2f = jnp.tile(b2f.reshape(1, C), (1, P))   # (1, P*C)
    else:
        b1f = b1f.reshape(1, H)
        b2f = b2f.reshape(1, C)

    N1 = P * H
    if N1 <= _MAX_HIDDEN_CHUNK or N1 % _LANES != 0:
        hidden_chunk = N1
    else:
        hidden_chunk = _MAX_HIDDEN_CHUNK
    N1p = _round_up(N1, hidden_chunk)
    if N1p != N1:
        w1f = jnp.pad(w1f, ((0, 0), (0, N1p - N1)))
        b1f = jnp.pad(b1f, ((0, 0), (0, N1p - N1)))
        w2f = jnp.pad(w2f, ((0, N1p - N1), (0, 0)))

    return MLPParams(
        w1=w1f.astype(jnp.bfloat16), b1=b1f,
        w2=w2f.astype(jnp.bfloat16), b2=b2f,
        n_embd=C, n_hidden=H, pack=P,
        hidden_chunk=hidden_chunk, num_hidden_chunks=N1p // hidden_chunk)


def _mlp_kernel(x_ref, w1_ref, b1_ref, w2_ref, b2_ref, o_ref, acc_ref):
    # grid = (row_blocks, hidden_chunks).  Axis 1 is the reduction over hidden
    # chunks: the output block index is constant along it, so acc_ref accumulates
    # and the result is written on the last chunk (pl.when init/finalize pattern).
    h_idx = pl.program_id(1)

    @pl.when(h_idx == 0)
    def _():
        acc_ref[...] = jnp.zeros_like(acc_ref)

    # x arrives in f32; cast to bf16 for the MXU here (VPU cast hides under
    # DMA/MXU slack) instead of paying an extra HBM pass in the wrapper.
    x = x_ref[...].astype(jnp.bfloat16)

    # c_fc chunk: bf16 MXU matmul with f32 accumulation; bias + exact-erf GELU in f32
    h = jnp.dot(x, w1_ref[...], preferred_element_type=jnp.float32) + b1_ref[...]
    h = 0.5 * h * (1.0 + jax.lax.erf(h * jnp.float32(0.7071067811865476)))

    # c_proj chunk: cast activations to bf16 for the MXU, accumulate in f32
    acc_ref[...] += jnp.dot(h.astype(jnp.bfloat16), w2_ref[...],
                            preferred_element_type=jnp.float32)

    @pl.when(h_idx == pl.num_programs(1) - 1)
    def _():
        # dropout p=0.0 -> identity (eval semantics)
        # TODO(synk): training-mode dropout (p>0) with the pltpu PRNG is not implemented.
        o_ref[...] = (acc_ref[...] + b2_ref[...]).astype(o_ref.dtype)


def _vmem_estimate(block_rows, K1, N2, hidden_chunk):
    weight_block = (K1 * hidden_chunk + hidden_chunk * N2) * 2 + (hidden_chunk + N2) * 4
    io_block = block_rows * (K1 + N2) * 4
    h_live = block_rows * hidden_chunk * 4
    acc = block_rows * N2 * 4
    return 2 * (weight_block + io_block) + acc + 2 * h_live


def _pick_block_rows(Mp, K1, N2, hidden_chunk):
    if Mp < 64:
        return Mp                      # launch/overhead-bound: one grid step
    # >= 2 row blocks so the "parallel" axis can shard across v7x's two TensorCores,
    # capped so blocks stay inside the VMEM budget at real GPT widths.
    bm = max(8, min(512, _round_up(pl.cdiv(Mp, 2), 8)))
    while bm > 64 and _vmem_estimate(bm, K1, N2, hidden_chunk) > _VMEM_TARGET_BYTES:
        bm = max(64, _round_up(bm // 2, 8))
    return bm


def _build_call(Mp, K1, N1p, N2, block_rows, hidden_chunk, num_chunks, out_dtype,
                single_buffer_resident):
    # Resident (constant-index) blocks gain nothing from double buffering; Buffered(1)
    # halves their VMEM footprint.  W1/W2/b1 are constant-index only when there is a
    # single hidden chunk; b2 always is.
    resident_kw = dict(pipeline_mode=pl.Buffered(1)) if single_buffer_resident else {}
    weight_kw = resident_kw if num_chunks == 1 else {}

    grid = (pl.cdiv(Mp, block_rows), num_chunks)

    cost = pl.CostEstimate(
        flops=2 * Mp * K1 * N1p + 2 * Mp * N1p * N2,
        transcendentals=Mp * N1p,
        bytes_accessed=(Mp * K1 * 4 + Mp * N2 * 4
                        + grid[0] * (K1 * N1p + N1p * N2) * 2
                        + (N1p + N2) * 4),
    )

    vmem_limit = int(min(64 << 20,
                         max(_vmem_estimate(block_rows, K1, N2, hidden_chunk) + (2 << 20),
                             32 << 20)))

    return pl.pallas_call(
        _mlp_kernel,
        out_shape=jax.ShapeDtypeStruct((Mp, N2), out_dtype),
        grid_spec=pltpu.PrefetchScalarGridSpec(
            num_scalar_prefetch=0,
            grid=grid,
            in_specs=[
                pl.BlockSpec((block_rows, K1), lambda i, h: (i, 0)),                  # x (f32)
                pl.BlockSpec((K1, hidden_chunk), lambda i, h: (0, h), **weight_kw),   # W1
                pl.BlockSpec((1, hidden_chunk), lambda i, h: (0, h), **weight_kw),    # b1
                pl.BlockSpec((hidden_chunk, N2), lambda i, h: (h, 0), **weight_kw),   # W2
                pl.BlockSpec((1, N2), lambda i, h: (0, 0), **resident_kw),            # b2
            ],
            out_specs=pl.BlockSpec((block_rows, N2), lambda i, h: (i, 0)),
            scratch_shapes=[pltpu.VMEM((block_rows, N2), jnp.float32)],
        ),
        compiler_params=pltpu.CompilerParams(
            dimension_semantics=("parallel", "arbitrary"),
            vmem_limit_bytes=vmem_limit,
        ),
        cost_estimate=cost,
    )


_SINGLE_BUFFER_OK = None   # probed on first call: does this jax accept pl.Buffered(1)?


def mlp_pallas(x, params: MLPParams, *, block_rows: Optional[int] = None, out_dtype=None):
    """Apply the MLP to x of shape (..., C) using pre-packed params."""
    global _SINGLE_BUFFER_OK
    C, P = params.n_embd, params.pack
    orig_shape = x.shape
    assert orig_shape[-1] == C
    if out_dtype is None:
        out_dtype = x.dtype

    M = x.size // C
    x2d = x.reshape(M, C)

    # keep the lane-dense packed layout for any M: pad tokens up to a multiple of P
    M_pad = _round_up(M, P)
    if M_pad != M:
        x2d = jnp.pad(x2d, ((0, M_pad - M), (0, 0)))
    Mp = M_pad // P
    K1 = P * C
    N2 = P * C
    N1p = params.hidden_chunk * params.num_hidden_chunks
    xp = x2d.reshape(Mp, K1)   # free view of the contiguous buffer; stays f32

    if block_rows is None:
        block_rows = _pick_block_rows(Mp, K1, N2, params.hidden_chunk)
    block_rows = min(block_rows, Mp)

    args = (xp, params.w1, params.b1, params.w2, params.b2)
    build = functools.partial(_build_call, Mp, K1, N1p, N2, block_rows,
                              params.hidden_chunk, params.num_hidden_chunks, out_dtype)

    if _SINGLE_BUFFER_OK is None:
        try:
            out = jax.block_until_ready(build(True)(*args))
            _SINGLE_BUFFER_OK = True
        except Exception:   # this jax rejects pipeline_mode on pallas_call specs
            _SINGLE_BUFFER_OK = False
            out = build(False)(*args)
    else:
        out = build(_SINGLE_BUFFER_OK)(*args)

    y = out.reshape(M_pad, C)
    if M_pad != M:
        y = y[:M]
    return y.reshape(orig_shape)


def mlp_reference(x2d, w1, b1, w2, b2):
    h = x2d.astype(jnp.float32) @ w1.astype(jnp.float32) + b1.astype(jnp.float32)
    h = 0.5 * h * (1.0 + jax.lax.erf(h * jnp.float32(0.7071067811865476)))
    return h @ w2.astype(jnp.float32) + b2.astype(jnp.float32)


if __name__ == "__main__":
    # config: n_embd=32, bias=True, dropout=0.0; input (batch=2, seq=8, n_embd=32)
    B, T, C = 2, 8, 32
    H = 4 * C

    key = jax.random.PRNGKey(0)
    kx, kw1, kb1, kw2, kb2 = jax.random.split(key, 5)

    x = jax.random.normal(kx, (B, T, C), dtype=jnp.float32)
    # deterministic synthetic parameters (Linear weights stored as [in, out])
    w1 = jax.random.normal(kw1, (C, H), dtype=jnp.float32) * 0.02
    b1 = jax.random.normal(kb1, (H,), dtype=jnp.float32) * 0.01
    w2 = jax.random.normal(kw2, (H, C), dtype=jnp.float32) * 0.02
    b2 = jax.random.normal(kb2, (C,), dtype=jnp.float32) * 0.01

    # pack/cast weights ONCE (parameter-prep time), reuse across calls
    params = prepare_mlp_params(w1, b1, w2, b2)

    out = mlp_pallas(x, params)
    out = jax.block_until_ready(out)

    ref = mlp_reference(x.reshape(B * T, C), w1, b1, w2, b2).reshape(B, T, C)
    assert out.shape == (B, T, C)
    # bf16 MXU operands with f32 accumulation -> bf16-appropriate tolerance vs f32 ref
    assert jnp.allclose(out, ref, atol=5e-3, rtol=2e-2), float(jnp.max(jnp.abs(out - ref)))

    print("KERNEL_OK")
</pallas_src>

<mosaic_0001>
module attributes {stable_mosaic.version = 11 : i64} {
  func.func @_mlp_kernel(%arg0: i32, %arg1: i32, %arg2: memref<4x128xf32, #tpu.memory_space<vmem>>, %arg3: memref<128x512xbf16, #tpu.memory_space<vmem>>, %arg4: memref<1x512xf32, #tpu.memory_space<vmem>>, %arg5: memref<512x128xbf16, #tpu.memory_space<vmem>>, %arg6: memref<1x128xf32, #tpu.memory_space<vmem>>, %arg7: memref<4x128xf32, #tpu.memory_space<vmem>>, %arg8: memref<4x128xf32, #tpu.memory_space<vmem>>) attributes {dimension_semantics = [#tpu.dimension_semantics<parallel>, #tpu.dimension_semantics<arbitrary>], iteration_bounds = array<i64: 1, 1>, scalar_prefetch = 0 : i64, scratch_operands = 1 : i64, tpu.core_type = #tpu.core_type<tc>, window_params = [{transform_indices = @transform_0, window_bounds = array<i64: 4, 128>}, {pipeline_mode = #tpu.pipeline_mode<synchronous>, transform_indices = @transform_1, window_bounds = array<i64: 128, 512>}, {pipeline_mode = #tpu.pipeline_mode<synchronous>, transform_indices = @transform_2, window_bounds = array<i64: 1, 512>}, {pipeline_mode = #tpu.pipeline_mode<synchronous>, transform_indices = @transform_3, window_bounds = array<i64: 512, 128>}, {pipeline_mode = #tpu.pipeline_mode<synchronous>, transform_indices = @transform_4, window_bounds = array<i64: 1, 128>}, {transform_indices = @transform_5, window_bounds = array<i64: 4, 128>}]} {
    %c0_i32 = arith.constant 0 : i32
    %0 = arith.cmpi eq, %arg1, %c0_i32 : i32
    %1 = arith.extui %0 : i1 to i32
    %c0_i32_0 = arith.constant 0 : i32
    %2 = arith.cmpi ne, %1, %c0_i32_0 : i32
    scf.if %2 {
      %cst_18 = arith.constant 0.000000e+00 : f32
      %27 = vector.broadcast %cst_18 : f32 to vector<4x128xf32>
      %c0_19 = arith.constant 0 : index
      %c0_20 = arith.constant 0 : index
      %28 = vector.load %arg8[%c0_19, %c0_20] : memref<4x128xf32, #tpu.memory_space<vmem>>, vector<4x128xf32>
      tpu.vector_store %arg8[%c0_19, %c0_20], %27 {strides = array<i32>} : memref<4x128xf32, #tpu.memory_space<vmem>>, vector<4x128xf32>,
    } else {
    }
    %c0 = arith.constant 0 : index
    %c0_1 = arith.constant 0 : index
    %3 = vector.load %arg2[%c0, %c0_1] : memref<4x128xf32, #tpu.memory_space<vmem>>, vector<4x128xf32>
    %4 = arith.truncf %3 : vector<4x128xf32> to vector<4x128xbf16>
    %c0_2 = arith.constant 0 : index
    %c0_3 = arith.constant 0 : index
    %5 = vector.load %arg3[%c0_2, %c0_3] : memref<128x512xbf16, #tpu.memory_space<vmem>>, vector<128x512xbf16>
    %cst = arith.constant dense<0.000000e+00> : vector<4x512xf32>
    %6 = tpu.matmul %4, %5, %cst {dimension_numbers = #tpu.dot_dimension_numbers<[1], [0], [0], [1], [0, 0, 1, 1], [], []>} : vector<4x128xbf16>, vector<128x512xbf16>, vector<4x512xf32> -> vector<4x512xf32>
    %c0_4 = arith.constant 0 : index
    %c0_5 = arith.constant 0 : index
    %7 = vector.load %arg4[%c0_4, %c0_5] : memref<1x512xf32, #tpu.memory_space<vmem>>, vector<1x512xf32>
    %8 = vector.broadcast %7 : vector<1x512xf32> to vector<4x512xf32>
    %9 = arith.addf %6, %8 : vector<4x512xf32>
    %cst_6 = arith.constant 5.000000e-01 : f32
    %10 = vector.broadcast %cst_6 : f32 to vector<4x512xf32>
    %11 = arith.mulf %10, %9 : vector<4x512xf32>
    %cst_7 = arith.constant 0.707106769 : f32
    %12 = vector.broadcast %cst_7 : f32 to vector<4x512xf32>
    %13 = arith.mulf %9, %12 : vector<4x512xf32>
    %14 = math.erf %13 : vector<4x512xf32>
    %cst_8 = arith.constant 1.000000e+00 : f32
    %15 = vector.broadcast %cst_8 : f32 to vector<4x512xf32>
    %16 = arith.addf %15, %14 : vector<4x512xf32>
    %17 = arith.mulf %11, %16 : vector<4x512xf32>
    %c0_9 = arith.constant 0 : index
    %c0_10 = arith.constant 0 : index
    %18 = vector.load %arg8[%c0_9, %c0_10] : memref<4x128xf32, #tpu.memory_space<vmem>>, vector<4x128xf32>
    %19 = arith.truncf %17 : vector<4x512xf32> to vector<4x512xbf16>
    %c0_11 = arith.constant 0 : index
    %c0_12 = arith.constant 0 : index
    %20 = vector.load %arg5[%c0_11, %c0_12] : memref<512x128xbf16, #tpu.memory_space<vmem>>, vector<512x128xbf16>
    %cst_13 = arith.constant dense<0.000000e+00> : vector<4x128xf32>
    %21 = tpu.matmul %19, %20, %cst_13 {dimension_numbers = #tpu.dot_dimension_numbers<[1], [0], [0], [1], [0, 0, 1, 1], [], []>} : vector<4x512xbf16>, vector<512x128xbf16>, vector<4x128xf32> -> vector<4x128xf32>
    %22 = arith.addf %18, %21 : vector<4x128xf32>
    %c0_14 = arith.constant 0 : index
    %c0_15 = arith.constant 0 : index
    %23 = vector.load %arg8[%c0_14, %c0_15] : memref<4x128xf32, #tpu.memory_space<vmem>>, vector<4x128xf32>
    tpu.vector_store %arg8[%c0_14, %c0_15], %22 {strides = array<i32>} : memref<4x128xf32, #tpu.memory_space<vmem>>, vector<4x128xf32>,
    %c0_i32_16 = arith.constant 0 : i32
    %24 = arith.cmpi eq, %arg1, %c0_i32_16 : i32
    %25 = arith.extui %24 : i1 to i32
    %c0_i32_17 = arith.constant 0 : i32
    %26 = arith.cmpi ne, %25, %c0_i32_17 : i32
    scf.if %26 {
      %c0_18 = arith.constant 0 : index
      %c0_19 = arith.constant 0 : index
      %27 = vector.load %arg8[%c0_18, %c0_19] : memref<4x128xf32, #tpu.memory_space<vmem>>, vector<4x128xf32>
      %c0_20 = arith.constant 0 : index
      %c0_21 = arith.constant 0 : index
      %28 = vector.load %arg6[%c0_20, %c0_21] : memref<1x128xf32, #tpu.memory_space<vmem>>, vector<1x128xf32>
      %29 = vector.broadcast %28 : vector<1x128xf32> to vector<4x128xf32>
      %30 = arith.addf %27, %29 : vector<4x128xf32>
      %c0_22 = arith.constant 0 : index
      %c0_23 = arith.constant 0 : index
      %31 = vector.load %arg7[%c0_22, %c0_23] : memref<4x128xf32, #tpu.memory_space<vmem>>, vector<4x128xf32>
      tpu.vector_store %arg7[%c0_22, %c0_23], %30 {strides = array<i32>} : memref<4x128xf32, #tpu.memory_space<vmem>>, vector<4x128xf32>,
    } else {
    }
    return
  }
  func.func @transform_0(%arg0: i32, %arg1: i32) -> (i32, i32) {
    %c0_i32 = arith.constant 0 : i32
    %c0_i32_0 = arith.constant 0 : i32
    return %arg0, %c0_i32 : i32, i32
  }
  func.func @transform_1(%arg0: i32, %arg1: i32) -> (i32, i32) {
    %c0_i32 = arith.constant 0 : i32
    %c0_i32_0 = arith.constant 0 : i32
    return %c0_i32, %arg1 : i32, i32
  }
  func.func @transform_2(%arg0: i32, %arg1: i32) -> (i32, i32) {
    %c0_i32 = arith.constant 0 : i32
    %c0_i32_0 = arith.constant 0 : i32
    return %c0_i32, %arg1 : i32, i32
  }
  func.func @transform_3(%arg0: i32, %arg1: i32) -> (i32, i32) {
    %c0_i32 = arith.constant 0 : i32
    %c0_i32_0 = arith.constant 0 : i32
    return %arg1, %c0_i32 : i32, i32
  }
  func.func @transform_4(%arg0: i32, %arg1: i32) -> (i32, i32) {
    %c0_i32 = arith.constant 0 : i32
    %c0_i32_0 = arith.constant 0 : i32
    %c0_i32_1 = arith.constant 0 : i32
    return %c0_i32, %c0_i32_0 : i32, i32
  }
  func.func @transform_5(%arg0: i32, %arg1: i32) -> (i32, i32) {
    %c0_i32 = arith.constant 0 : i32
    %c0_i32_0 = arith.constant 0 : i32
    return %arg0, %c0_i32 : i32, i32
  }
}

module attributes {stable_mosaic.version = 11 : i64} {
  func.func @_mlp_kernel(%arg0: i32, %arg1: i32, %arg2: memref<4x128xf32, #tpu.memory_space<vmem>>, %arg3: memref<128x512xbf16, #tpu.memory_space<vmem>>, %arg4: memref<1x512xf32, #tpu.memory_space<vmem>>, %arg5: memref<512x128xbf16, #tpu.memory_space<vmem>>, %arg6: memref<1x128xf32, #tpu.memory_space<vmem>>, %arg7: memref<4x128xf32, #tpu.memory_space<vmem>>, %arg8: memref<4x128xf32, #tpu.memory_space<vmem>>) attributes {dimension_semantics = [#tpu.dimension_semantics<parallel>, #tpu.dimension_semantics<arbitrary>], iteration_bounds = array<i64: 1, 1>, scalar_prefetch = 0 : i64, scratch_operands = 1 : i64, tpu.core_type = #tpu.core_type<tc>, window_params = [{transform_indices = @transform_0, window_bounds = array<i64: 4, 128>}, {transform_indices = @transform_1, window_bounds = array<i64: 128, 512>}, {transform_indices = @transform_2, window_bounds = array<i64: 1, 512>}, {transform_indices = @transform_3, window_bounds = array<i64: 512, 128>}, {pipeline_mode = #tpu.pipeline_mode<synchronous>, transform_indices = @transform_4, window_bounds = array<i64: 1, 128>}, {transform_indices = @transform_5, window_bounds = array<i64: 4, 128>}]} {
    %c0_i32 = arith.constant 0 : i32
    %0 = arith.cmpi eq, %arg1, %c0_i32 : i32
    %1 = arith.extui %0 : i1 to i32
    %c0_i32_0 = arith.constant 0 : i32
    %2 = arith.cmpi ne, %1, %c0_i32_0 : i32
    scf.if %2 {
      %cst_18 = arith.constant 0.000000e+00 : f32
      %27 = vector.broadcast %cst_18 : f32 to vector<4x128xf32>
      %c0_19 = arith.constant 0 : index
      %c0_20 = arith.constant 0 : index
      %28 = vector.load %arg8[%c0_19, %c0_20] : memref<4x128xf32, #tpu.memory_space<vmem>>, vector<4x128xf32>
      tpu.vector_store %arg8[%c0_19, %c0_20], %27 {strides = array<i32>} : memref<4x128xf32, #tpu.memory_space<vmem>>, vector<4x128xf32>,
    } else {
    }
    %c0 = arith.constant 0 : index
    %c0_1 = arith.constant 0 : index
    %3 = vector.load %arg2[%c0, %c0_1] : memref<4x128xf32, #tpu.memory_space<vmem>>, vector<4x128xf32>
    %4 = arith.truncf %3 : vector<4x128xf32> to vector<4x128xbf16>
    %c0_2 = arith.constant 0 : index
    %c0_3 = arith.constant 0 : index
    %5 = vector.load %arg3[%c0_2, %c0_3] : memref<128x512xbf16, #tpu.memory_space<vmem>>, vector<128x512xbf16>
    %cst = arith.constant dense<0.000000e+00> : vector<4x512xf32>
    %6 = tpu.matmul %4, %5, %cst {dimension_numbers = #tpu.dot_dimension_numbers<[1], [0], [0], [1], [0, 0, 1, 1], [], []>} : vector<4x128xbf16>, vector<128x512xbf16>, vector<4x512xf32> -> vector<4x512xf32>
    %c0_4 = arith.constant 0 : index
    %c0_5 = arith.constant 0 : index
    %7 = vector.load %arg4[%c0_4, %c0_5] : memref<1x512xf32, #tpu.memory_space<vmem>>, vector<1x512xf32>
    %8 = vector.broadcast %7 : vector<1x512xf32> to vector<4x512xf32>
    %9 = arith.addf %6, %8 : vector<4x512xf32>
    %cst_6 = arith.constant 5.000000e-01 : f32
    %10 = vector.broadcast %cst_6 : f32 to vector<4x512xf32>
    %11 = arith.mulf %10, %9 : vector<4x512xf32>
    %cst_7 = arith.constant 0.707106769 : f32
    %12 = vector.broadcast %cst_7 : f32 to vector<4x512xf32>
    %13 = arith.mulf %9, %12 : vector<4x512xf32>
    %14 = math.erf %13 : vector<4x512xf32>
    %cst_8 = arith.constant 1.000000e+00 : f32
    %15 = vector.broadcast %cst_8 : f32 to vector<4x512xf32>
    %16 = arith.addf %15, %14 : vector<4x512xf32>
    %17 = arith.mulf %11, %16 : vector<4x512xf32>
    %c0_9 = arith.constant 0 : index
    %c0_10 = arith.constant 0 : index
    %18 = vector.load %arg8[%c0_9, %c0_10] : memref<4x128xf32, #tpu.memory_space<vmem>>, vector<4x128xf32>
    %19 = arith.truncf %17 : vector<4x512xf32> to vector<4x512xbf16>
    %c0_11 = arith.constant 0 : index
    %c0_12 = arith.constant 0 : index
    %20 = vector.load %arg5[%c0_11, %c0_12] : memref<512x128xbf16, #tpu.memory_space<vmem>>, vector<512x128xbf16>
    %cst_13 = arith.constant dense<0.000000e+00> : vector<4x128xf32>
    %21 = tpu.matmul %19, %20, %cst_13 {dimension_numbers = #tpu.dot_dimension_numbers<[1], [0], [0], [1], [0, 0, 1, 1], [], []>} : vector<4x512xbf16>, vector<512x128xbf16>, vector<4x128xf32> -> vector<4x128xf32>
    %22 = arith.addf %18, %21 : vector<4x128xf32>
    %c0_14 = arith.constant 0 : index
    %c0_15 = arith.constant 0 : index
    %23 = vector.load %arg8[%c0_14, %c0_15] : memref<4x128xf32, #tpu.memory_space<vmem>>, vector<4x128xf32>
    tpu.vector_store %arg8[%c0_14, %c0_15], %22 {strides = array<i32>} : memref<4x128xf32, #tpu.memory_space<vmem>>, vector<4x128xf32>,
    %c0_i32_16 = arith.constant 0 : i32
    %24 = arith.cmpi eq, %arg1, %c0_i32_16 : i32
    %25 = arith.extui %24 : i1 to i32
    %c0_i32_17 = arith.constant 0 : i32
    %26 = arith.cmpi ne, %25, %c0_i32_17 : i32
    scf.if %26 {
      %c0_18 = arith.constant 0 : index
      %c0_19 = arith.constant 0 : index
      %27 = vector.load %arg8[%c0_18, %c0_19] : memref<4x128xf32, #tpu.memory_space<vmem>>, vector<4x128xf32>
      %c0_20 = arith.constant 0 : index
      %c0_21 = arith.constant 0 : index
      %28 = vector.load %arg6[%c0_20, %c0_21] : memref<1x128xf32, #tpu.memory_space<vmem>>, vector<1x128xf32>
      %29 = vector.broadcast %28 : vector<1x128xf32> to vector<4x128xf32>
      %30 = arith.addf %27, %29 : vector<4x128xf32>
      %c0_22 = arith.constant 0 : index
      %c0_23 = arith.constant 0 : index
      %31 = vector.load %arg7[%c0_22, %c0_23] : memref<4x128xf32, #tpu.memory_space<vmem>>, vector<4x128xf32>
      tpu.vector_store %arg7[%c0_22, %c0_23], %30 {strides = array<i32>} : memref<4x128xf32, #tpu.memory_space<vmem>>, vector<4x128xf32>,
    } else {
    }
    return
  }
  func.func @transform_0(%arg0: i32, %arg1: i32) -> (i32, i32) {
    %c0_i32 = arith.constant 0 : i32
    %c0_i32_0 = arith.constant 0 : i32
    return %arg0, %c0_i32 : i32, i32
  }
  func.func @transform_1(%arg0: i32, %arg1: i32) -> (i32, i32) {
    %c0_i32 = arith.constant 0 : i32
    %c0_i32_0 = arith.constant 0 : i32
    return %c0_i32, %arg1 : i32, i32
  }
  func.func @transform_2(%arg0: i32, %arg1: i32) -> (i32, i32) {
    %c0_i32 = arith.constant 0 : i32
    %c0_i32_0 = arith.constant 0 : i32
    return %c0_i32, %arg1 : i32, i32
  }
  func.func @transform_3(%arg0: i32, %arg1: i32) -> (i32, i32) {
    %c0_i32 = arith.constant 0 : i32
    %c0_i32_0 = arith.constant 0 : i32
    return %arg1, %c0_i32 : i32, i32
  }
  func.func @transform_4(%arg0: i32, %arg1: i32) -> (i32, i32) {
    %c0_i32 = arith.constant 0 : i32
    %c0_i32_0 = arith.constant 0 : i32
    %c0_i32_1 = arith.constant 0 : i32
    return %c0_i32, %c0_i32_0 : i32, i32
  }
  func.func @transform_5(%arg0: i32, %arg1: i32) -> (i32, i32) {
    %c0_i32 = arith.constant 0 : i32
    %c0_i32_0 = arith.constant 0 : i32
    return %arg0, %c0_i32 : i32, i32
  }
}

</mosaic_0001>

<llo_original>
// kernel: tpu_custom_call.1
$region0: #{tpu_custom_call.1}
  #allocation0 [shape = 'u32[]', space=smem, size = 0x4, offset = 0x4, fixed_abs, tag = 'smem constant byte address 0x4 - core index']
  #allocation1 [shape = 'u32[144,128]{1,0:T(1,128)}', space=vmem, size = 0x12000, scoped, tag = 'internal scratch']
  #allocation2 [shape = 'f32[4,128]{1,0:T(4,128)}', space=vmem, size = 0x800, scoped, tag = 'scratch operand']
  %s0 = inlined_call_operand.hbm [shape: f32[4,128], index: 0, kind: input, shape index: {}]
  %s1 = inlined_call_operand.hbm [shape: bf16[128,512], index: 1, kind: input, shape index: {}]
  %s2 = inlined_call_operand.vmem [shape: f32[1,512], index: 2, kind: input, shape index: {}]
  %s3 = inlined_call_operand.hbm [shape: bf16[512,128], index: 3, kind: input, shape index: {}]
  %s4 = inlined_call_operand.vmem [shape: f32[1,128], index: 4, kind: input, shape index: {}]
  %s5 = inlined_call_operand.hbm [shape: f32[4,128], index: 5, kind: output, shape index: {}]
  %s6 = sld [smem:[#allocation0]]
  $region50: #{tpu_custom_call.1} parent=0
    _
  %s8 = ssub.s32 1, %s6
  %s9 = scalar_select 0, %s8, %s6
  $region1: #{tpu_custom_call.1} parent=0
    #allocation3 [shape = 'u8[2048]{0}', space=vmem, size = 0x800, scoped, tag = 'input window, operand 0, single buffered']
    #allocation4 [shape = 's32[1]{0}', space=sflag, size = 0x4, scoped, tag = 'scoped memory for tpu_custom_call.1']
    #allocation5 [shape = 's32[1]{0}', space=sflag, size = 0x4, scoped, tag = 'scoped memory for tpu_custom_call.1']
    #allocation6 [shape = 'u8[131072]{0}', space=vmem, size = 0x20000, scoped, tag = 'input window, operand 1, single buffered']
    #allocation7 [shape = 's32[1]{0}', space=sflag, size = 0x4, scoped, tag = 'scoped memory for tpu_custom_call.1']
    #allocation8 [shape = 'u8[131072]{0}', space=vmem, size = 0x20000, scoped, tag = 'input window, operand 3, single buffered']
    #allocation9 [shape = 'u8[2048]{0}', space=vmem, size = 0x800, scoped, tag = 'output window, operand 0, single buffered']
    %10 = vsyncpa [#allocation4], 0
    %11 = vsyncpa [#allocation7], 0
    %12 = vsyncpa [#allocation5], 0
    // Predicated region
    $region2: #{tpu_custom_call.1} parent=1 // pred_check
      _
    $region3: #{tpu_custom_call.1} parent=1 // pred_check_branch
      %14 = sbr.rel (0) target = $region5
    $region4: #{tpu_custom_call.1} parent=1 // pred_region
      %s16 = ssub.s32 64, 64
      %17 = vsyncadd [#allocation4], %s16
      %s19 = sshll.u32 [#allocation3], 4
      %s20 = int_to_ptr.vmem [resolvable:$true] %s19
      %22 = dma.hbm_to_vmem [thread:$0]  %s0, 64, %s20, [#allocation4]
    $region5: #{tpu_custom_call.1} parent=1 // pred_fallthru
      _
    // Predicated region
    $region6: #{tpu_custom_call.1} parent=1 // pred_check
      _
    $region7: #{tpu_custom_call.1} parent=1 // pred_check_branch
      %24 = sbr.rel (0) target = $region9
    $region8: #{tpu_custom_call.1} parent=1 // pred_region
      %s26 = ssub.s32 4096, 4096
      %27 = vsyncadd [#allocation7], %s26
      %s28 = sshll.u32 [#allocation6], 4
      %s29 = int_to_ptr.vmem [resolvable:$true] %s28
      %34 = dma.hbm_to_vmem [thread:$0]  %s1, 4096, %s29, [#allocation7], 256, 256, 16
    $region9: #{tpu_custom_call.1} parent=1 // pred_fallthru
      _
    // Predicated region
    $region10: #{tpu_custom_call.1} parent=1 // pred_check
      _
    $region11: #{tpu_custom_call.1} parent=1 // pred_check_branch
      %36 = sbr.rel (0) target = $region13
    $region12: #{tpu_custom_call.1} parent=1 // pred_region
      _
    $region13: #{tpu_custom_call.1} parent=1 // pred_fallthru
      _
    // Predicated region
    $region14: #{tpu_custom_call.1} parent=1 // pred_check
      _
    $region15: #{tpu_custom_call.1} parent=1 // pred_check_branch
      %38 = sbr.rel (0) target = $region17
    $region16: #{tpu_custom_call.1} parent=1 // pred_region
      %s40 = ssub.s32 4096, 4096
      %41 = vsyncadd [#allocation7], %s40
      %s42 = sshll.u32 [#allocation8], 4
      %s43 = int_to_ptr.vmem [resolvable:$true] %s42
      %48 = dma.hbm_to_vmem [thread:$0]  %s3, 4096, %s43, [#allocation7], 64, 64, 4
    $region17: #{tpu_custom_call.1} parent=1 // pred_fallthru
      _
    // Predicated region
    $region18: #{tpu_custom_call.1} parent=1 // pred_check
      _
    $region19: #{tpu_custom_call.1} parent=1 // pred_check_branch
      %50 = sbr.rel (0) target = $region21
    $region20: #{tpu_custom_call.1} parent=1 // pred_region
      _
    $region21: #{tpu_custom_call.1} parent=1 // pred_fallthru
      _
    // Predicated region
    $region22: #{tpu_custom_call.1} parent=1 // pred_check
      _
    $region23: #{tpu_custom_call.1} parent=1 // pred_check_branch
      %52 = sbr.rel (0) target = $region25
    $region24: #{tpu_custom_call.1} parent=1 // pred_region
      %53 = dma.done [#allocation4], 64
    $region25: #{tpu_custom_call.1} parent=1 // pred_fallthru
      _
    // Predicated region
    $region26: #{tpu_custom_call.1} parent=1 // pred_check
      _
    $region27: #{tpu_custom_call.1} parent=1 // pred_check_branch
      %55 = sbr.rel (0) target = $region29
    $region28: #{tpu_custom_call.1} parent=1 // pred_region
      %56 = dma.done [#allocation7], 4096
    $region29: #{tpu_custom_call.1} parent=1 // pred_fallthru
      _
    // Predicated region
    $region30: #{tpu_custom_call.1} parent=1 // pred_check
      _
    $region31: #{tpu_custom_call.1} parent=1 // pred_check_branch
      %58 = sbr.rel (0) target = $region33
    $region32: #{tpu_custom_call.1} parent=1 // pred_region
      %59 = dma.done [#allocation7], 4096
    $region33: #{tpu_custom_call.1} parent=1 // pred_fallthru
      _
    %p61 = scmp.eq.s32.totalorder 0, 0
    // Predicated region
    $region34: #{tpu_custom_call.1} parent=1 // pred_check
      %p62 = pneg %p61
    $region35: #{tpu_custom_call.1} parent=1 // pred_check_branch
      %64 = sbr.rel (%p62) target = $region37
    $region36: #{tpu_custom_call.1} parent=1 // pred_region
      %65 = vst [vmem:[#allocation2] sm:$0xf] 0.0
    $region37: #{tpu_custom_call.1} parent=1 // pred_fallthru
      _
    %v66 = vld [vmem:[#allocation3] sm:$0xf]
    %v67 = vpack.c.bf16 %v66, %v66
    %v68 = vld [vmem:[#allocation6] sm:$0xff]
    %v69 = vld [vmem:[#allocation6 + $0x8] sm:$0xff]
    %v70 = vld [vmem:[#allocation6 + $0x10] sm:$0xff]
    %v71 = vld [vmem:[#allocation6 + $0x18] sm:$0xff]
    %v72 = vld [vmem:[#allocation6 + $0x20] sm:$0xff]
    %v73 = vld [vmem:[#allocation6 + $0x28] sm:$0xff]
    %v74 = vld [vmem:[#allocation6 + $0x30] sm:$0xff]
    %v75 = vld [vmem:[#allocation6 + $0x38] sm:$0xff]
    %v76 = vld [vmem:[#allocation6 + $0x40] sm:$0xff]
    %v77 = vld [vmem:[#allocation6 + $0x48] sm:$0xff]
    %v78 = vld [vmem:[#allocation6 + $0x50] sm:$0xff]
    %v79 = vld [vmem:[#allocation6 + $0x58] sm:$0xff]
    %v80 = vld [vmem:[#allocation6 + $0x60] sm:$0xff]
    %v81 = vld [vmem:[#allocation6 + $0x68] sm:$0xff]
    %v82 = vld [vmem:[#allocation6 + $0x70] sm:$0xff]
    %v83 = vld [vmem:[#allocation6 + $0x78] sm:$0xff]
    %v84 = vld [vmem:[#allocation6 + $0x80] sm:$0xff]
    %v85 = vld [vmem:[#allocation6 + $0x88] sm:$0xff]
    %v86 = vld [vmem:[#allocation6 + $0x90] sm:$0xff]
    %v87 = vld [vmem:[#allocation6 + $0x98] sm:$0xff]
    %v88 = vld [vmem:[#allocation6 + $0xa0] sm:$0xff]
    %v89 = vld [vmem:[#allocation6 + $0xa8] sm:$0xff]
    %v90 = vld [vmem:[#allocation6 + $0xb0] sm:$0xff]
    %v91 = vld [vmem:[#allocation6 + $0xb8] sm:$0xff]
    %v92 = vld [vmem:[#allocation6 + $0xc0] sm:$0xff]
    %v93 = vld [vmem:[#allocation6 + $0xc8] sm:$0xff]
    %v94 = vld [vmem:[#allocation6 + $0xd0] sm:$0xff]
    %v95 = vld [vmem:[#allocation6 + $0xd8] sm:$0xff]
    %v96 = vld [vmem:[#allocation6 + $0xe0] sm:$0xff]
    %v97 = vld [vmem:[#allocation6 + $0xe8] sm:$0xff]
    %v98 = vld [vmem:[#allocation6 + $0xf0] sm:$0xff]
    %v99 = vld [vmem:[#allocation6 + $0xf8] sm:$0xff]
    %v100 = vld [vmem:[%s2] sm:$0xf]
    %v102 = vlaneseq
    %v103 = vshrl.u32 %v102, 7
    %v104 = vsub.s32 0, %v103
    %v105 = vrot.slane %v100, %v104
    %v106 = vlaneseq
    %v107 = vshrl.u32 %v106, 7
    %v108 = vsub.s32 1, %v107
    %v109 = vrot.slane %v100, %v108
    %v110 = vlaneseq
    %v111 = vshrl.u32 %v110, 7
    %v112 = vsub.s32 2, %v111
    %v113 = vrot.slane %v100, %v112
    %v114 = vlaneseq
    %v115 = vshrl.u32 %v114, 7
    %v116 = vsub.s32 3, %v115
    %v117 = vrot.slane %v100, %v116
    %v154 = vunpack.c.l.b16 %v68
    %v155 = vunpack.c.h.b16 %v68
    %v156 = vunpack.c.l.b16 %v69
    %v157 = vunpack.c.h.b16 %v69
    %v158 = vunpack.c.l.b16 %v70
    %v159 = vunpack.c.h.b16 %v70
    %v160 = vunpack.c.l.b16 %v71
    %v161 = vunpack.c.h.b16 %v71
    %v162 = vunpack.c.l.b16 %v72
    %v163 = vunpack.c.h.b16 %v72
    %v164 = vunpack.c.l.b16 %v73
    %v165 = vunpack.c.h.b16 %v73
    %v166 = vunpack.c.l.b16 %v74
    %v167 = vunpack.c.h.b16 %v74
    %v168 = vunpack.c.l.b16 %v75
    %v169 = vunpack.c.h.b16 %v75
    %v170 = vunpack.c.l.b16 %v76
    %v171 = vunpack.c.h.b16 %v76
    %v172 = vunpack.c.l.b16 %v77
    %v173 = vunpack.c.h.b16 %v77
    %v174 = vunpack.c.l.b16 %v78
    %v175 = vunpack.c.h.b16 %v78
    %v176 = vunpack.c.l.b16 %v79
    %v177 = vunpack.c.h.b16 %v79
    %v178 = vunpack.c.l.b16 %v80
    %v179 = vunpack.c.h.b16 %v80
    %v180 = vunpack.c.l.b16 %v81
    %v181 = vunpack.c.h.b16 %v81
    %v182 = vunpack.c.l.b16 %v82
    %v183 = vunpack.c.h.b16 %v82
    %v184 = vunpack.c.l.b16 %v83
    %v185 = vunpack.c.h.b16 %v83
    %v186 = vunpack.c.l.b16 %v84
    %v187 = vunpack.c.h.b16 %v84
    %v188 = vunpack.c.l.b16 %v85
    %v189 = vunpack.c.h.b16 %v85
    %v190 = vunpack.c.l.b16 %v86
    %v191 = vunpack.c.h.b16 %v86
    %v192 = vunpack.c.l.b16 %v87
    %v193 = vunpack.c.h.b16 %v87
    %v194 = vunpack.c.l.b16 %v88
    %v195 = vunpack.c.h.b16 %v88
    %v196 = vunpack.c.l.b16 %v89
    %v197 = vunpack.c.h.b16 %v89
    %v198 = vunpack.c.l.b16 %v90
    %v199 = vunpack.c.h.b16 %v90
    %v200 = vunpack.c.l.b16 %v91
    %v201 = vunpack.c.h.b16 %v91
    %v202 = vunpack.c.l.b16 %v92
    %v203 = vunpack.c.h.b16 %v92
    %v204 = vunpack.c.l.b16 %v93
    %v205 = vunpack.c.h.b16 %v93
    %v206 = vunpack.c.l.b16 %v94
    %v207 = vunpack.c.h.b16 %v94
    %v208 = vunpack.c.l.b16 %v95
    %v209 = vunpack.c.h.b16 %v95
    %v210 = vunpack.c.l.b16 %v96
    %v211 = vunpack.c.h.b16 %v96
    %v212 = vunpack.c.l.b16 %v97
    %v213 = vunpack.c.h.b16 %v97
    %v214 = vunpack.c.l.b16 %v98
    %v215 = vunpack.c.h.b16 %v98
    %v216 = vunpack.c.l.b16 %v99
    %v217 = vunpack.c.h.b16 %v99
    %v218 = vpack.c.b16 %v158, %v154
    %v219 = vpack.c.b16 %v159, %v155
    %v220 = vpack.c.b16 %v160, %v156
    %v221 = vpack.c.b16 %v161, %v157
    %v222 = vpack.c.b16 %v166, %v162
    %v223 = vpack.c.b16 %v167, %v163
    %v224 = vpack.c.b16 %v168, %v164
    %v225 = vpack.c.b16 %v169, %v165
    %v226 = vpack.c.b16 %v174, %v170
    %v227 = vpack.c.b16 %v175, %v171
    %v228 = vpack.c.b16 %v176, %v172
    %v229 = vpack.c.b16 %v177, %v173
    %v230 = vpack.c.b16 %v182, %v178
    %v231 = vpack.c.b16 %v183, %v179
    %v232 = vpack.c.b16 %v184, %v180
    %v233 = vpack.c.b16 %v185, %v181
    %v234 = vpack.c.b16 %v190, %v186
    %v235 = vpack.c.b16 %v191, %v187
    %v236 = vpack.c.b16 %v192, %v188
    %v237 = vpack.c.b16 %v193, %v189
    %v238 = vpack.c.b16 %v198, %v194
    %v239 = vpack.c.b16 %v199, %v195
    %v240 = vpack.c.b16 %v200, %v196
    %v241 = vpack.c.b16 %v201, %v197
    %v242 = vpack.c.b16 %v206, %v202
    %v243 = vpack.c.b16 %v207, %v203
    %v244 = vpack.c.b16 %v208, %v204
    %v245 = vpack.c.b16 %v209, %v205
    %v246 = vpack.c.b16 %v214, %v210
    %v247 = vpack.c.b16 %v215, %v211
    %v248 = vpack.c.b16 %v216, %v212
    %v249 = vpack.c.b16 %v217, %v213
    %282 = vmatprep.subr.bf16.mxu0 %v219
    %283 = vmatpush1.bf16.msra.mxu0 %v218
    %284 = vmatprep.subr.bf16.mxu0 %v223
    %285 = vmatpush1.bf16.msra.mxu0 %v222
    %286 = vmatprep.subr.bf16.mxu0 %v227
    %287 = vmatpush1.bf16.msra.mxu0 %v226
    %288 = vmatprep.subr.bf16.mxu0 %v231
    %289 = vmatpush1.bf16.msra.mxu0 %v230
    %290 = vmatprep.subr.bf16.mxu0 %v235
    %291 = vmatpush1.bf16.msra.mxu0 %v234
    %292 = vmatprep.subr.bf16.mxu0 %v239
    %293 = vmatpush1.bf16.msra.mxu0 %v238
    %294 = vmatprep.subr.bf16.mxu0 %v243
    %295 = vmatpush1.bf16.msra.mxu0 %v242
    %296 = vmatprep.subr.bf16.mxu0 %v247
    %297 = vmatpush1.bf16.msra.mxu0 %v246
    %298 = vmatprep.subr.bf16.mxu0 0
    %299 = vmatpush1.bf16.msra.mxu0 0
    %300 = vmatprep.subr.bf16.mxu0 0
    %301 = vmatpush1.bf16.msra.mxu0 0
    %302 = vmatprep.subr.bf16.mxu0 0
    %303 = vmatpush1.bf16.msra.mxu0 0
    %304 = vmatprep.subr.bf16.mxu0 0
    %305 = vmatpush1.bf16.msra.mxu0 0
    %306 = vmatprep.subr.bf16.mxu0 0
    %307 = vmatpush1.bf16.msra.mxu0 0
    %308 = vmatprep.subr.bf16.mxu0 0
    %309 = vmatpush1.bf16.msra.mxu0 0
    %310 = vmatprep.subr.bf16.mxu0 0
    %311 = vmatpush1.bf16.msra.mxu0 0
    %312 = vmatprep.subr.bf16.mxu0 0
    %313 = vmatpush1.bf16.msra.mxu0 0
    %314 = vmatprep.mubr.bf16.mxu0 0
    %315 = vmatmul.mubr.bf16.gmra.mrb[0].mxu0 %v67
    %v316 = vpop.f32.mrb[0].mxu0
    %v317 = vadd.f32 %v105, %v316
    %v318 = vpop.f32.mrb[0].mxu0
    %v319 = vadd.f32 %v109, %v318
    %v320 = vpop.f32.mrb[0].mxu0
    %v321 = vpop.f32.mrb[0].mxu0
    %322 = vdwg.mxu0
    %323 = vmatprep.subr.bf16.mxu0 %v221
    %324 = vmatpush1.bf16.msra.mxu0 %v220
    %325 = vmatprep.subr.bf16.mxu0 %v225
    %326 = vmatpush1.bf16.msra.mxu0 %v224
    %327 = vmatprep.subr.bf16.mxu0 %v229
    %328 = vmatpush1.bf16.msra.mxu0 %v228
    %329 = vmatprep.subr.bf16.mxu0 %v233
    %330 = vmatpush1.bf16.msra.mxu0 %v232
    %331 = vmatprep.subr.bf16.mxu0 %v237
    %332 = vmatpush1.bf16.msra.mxu0 %v236
    %333 = vmatprep.subr.bf16.mxu0 %v241
    %334 = vmatpush1.bf16.msra.mxu0 %v240
    %335 = vmatprep.subr.bf16.mxu0 %v245
    %336 = vmatpush1.bf16.msra.mxu0 %v244
    %337 = vmatprep.subr.bf16.mxu0 %v249
    %338 = vmatpush1.bf16.msra.mxu0 %v248
    %339 = vmatprep.subr.bf16.mxu0 0
    %340 = vmatpush1.bf16.msra.mxu0 0
    %341 = vmatprep.subr.bf16.mxu0 0
    %342 = vmatpush1.bf16.msra.mxu0 0
    %343 = vmatprep.subr.bf16.mxu0 0
    %344 = vmatpush1.bf16.msra.mxu0 0
    %345 = vmatprep.subr.bf16.mxu0 0
    %346 = vmatpush1.bf16.msra.mxu0 0
    %347 = vmatprep.subr.bf16.mxu0 0
    %348 = vmatpush1.bf16.msra.mxu0 0
    %349 = vmatprep.subr.bf16.mxu0 0
    %350 = vmatpush1.bf16.msra.mxu0 0
    %351 = vmatprep.subr.bf16.mxu0 0
    %352 = vmatpush1.bf16.msra.mxu0 0
    %353 = vmatprep.subr.bf16.mxu0 0
    %354 = vmatpush1.bf16.msra.mxu0 0
    %355 = vmatprep.mubr.bf16.mxu0 0
    %356 = vmatmul.mubr.bf16.gmra.mrb[0].mxu0 %v67
    %v357 = vpop.f32.mrb[0].mxu0
    %v358 = vadd.f32 %v113, %v357
    %v359 = vpop.f32.mrb[0].mxu0
    %v360 = vadd.f32 %v117, %v359
    %v361 = vpop.f32.mrb[0].mxu0
    %v362 = vpop.f32.mrb[0].mxu0
    %363 = vdwg.mxu0
    %v364 = vmul.f32 %v317, 0.5
    %v365 = vmul.f32 %v319, 0.5
    %v366 = vmul.f32 %v358, 0.5
    %v367 = vmul.f32 %v360, 0.5
    %v368 = vmul.f32 %v317, 0.70710677
    %v369 = vmul.f32 %v319, 0.70710677
    %v370 = vmul.f32 %v358, 0.70710677
    %v371 = vmul.f32 %v360, 0.70710677
    %v372 = verf.f32.pop %v368
    %v373 = verf.f32.pop %v369
    %v374 = verf.f32.pop %v370
    %v375 = verf.f32.pop %v371
    %v376 = vadd.f32 %v372, 1.0
    %v377 = vadd.f32 %v373, 1.0
    %v378 = vadd.f32 %v374, 1.0
    %v379 = vadd.f32 %v375, 1.0
    %v380 = vmul.f32 %v364, %v376
    %v381 = vmul.f32 %v365, %v377
    %v382 = vmul.f32 %v366, %v378
    %v383 = vmul.f32 %v367, %v379
    %v384 = vld [vmem:[#allocation2] sm:$0xf]
    %v385 = vpack.c.bf16 %v380, %v380
    %v386 = vpack.c.bf16 %v381, %v381
    %v387 = vpack.c.bf16 %v382, %v382
    %v388 = vpack.c.bf16 %v383, %v383
    %v389 = vld [vmem:[#allocation8] sm:$0xf]
    %v390 = vld [vmem:[#allocation8 + $0x4] sm:$0xf]
    %v391 = vld [vmem:[#allocation8 + $0x8] sm:$0xf]
    %v392 = vld [vmem:[#allocation8 + $0xc] sm:$0xf]
    %v393 = vld [vmem:[#allocation8 + $0x10] sm:$0xf]
    %v394 = vld [vmem:[#allocation8 + $0x14] sm:$0xf]
    %v395 = vld [vmem:[#allocation8 + $0x18] sm:$0xf]
    %v396 = vld [vmem:[#allocation8 + $0x1c] sm:$0xf]
    %v397 = vld [vmem:[#allocation8 + $0x20] sm:$0xf]
    %v398 = vld [vmem:[#allocation8 + $0x24] sm:$0xf]
    %v399 = vld [vmem:[#allocation8 + $0x28] sm:$0xf]
    %v400 = vld [vmem:[#allocation8 + $0x2c] sm:$0xf]
    %v401 = vld [vmem:[#allocation8 + $0x30] sm:$0xf]
    %v402 = vld [vmem:[#allocation8 + $0x34] sm:$0xf]
    %v403 = vld [vmem:[#allocation8 + $0x38] sm:$0xf]
    %v404 = vld [vmem:[#allocation8 + $0x3c] sm:$0xf]
    %v405 = vld [vmem:[#allocation8 + $0x40] sm:$0xf]
    %v406 = vld [vmem:[#allocation8 + $0x44] sm:$0xf]
    %v407 = vld [vmem:[#allocation8 + $0x48] sm:$0xf]
    %v408 = vld [vmem:[#allocation8 + $0x4c] sm:$0xf]
    %v409 = vld [vmem:[#allocation8 + $0x50] sm:$0xf]
    %v410 = vld [vmem:[#allocation8 + $0x54] sm:$0xf]
    %v411 = vld [vmem:[#allocation8 + $0x58] sm:$0xf]
    %v412 = vld [vmem:[#allocation8 + $0x5c] sm:$0xf]
    %v413 = vld [vmem:[#allocation8 + $0x60] sm:$0xf]
    %v414 = vld [vmem:[#allocation8 + $0x64] sm:$0xf]
    %v415 = vld [vmem:[#allocation8 + $0x68] sm:$0xf]
    %v416 = vld [vmem:[#allocation8 + $0x6c] sm:$0xf]
    %v417 = vld [vmem:[#allocation8 + $0x70] sm:$0xf]
    %v418 = vld [vmem:[#allocation8 + $0x74] sm:$0xf]
    %v419 = vld [vmem:[#allocation8 + $0x78] sm:$0xf]
    %v420 = vld [vmem:[#allocation8 + $0x7c] sm:$0xf]
    %v421 = vld [vmem:[#allocation8 + $0x80] sm:$0xf]
    %v422 = vld [vmem:[#allocation8 + $0x84] sm:$0xf]
    %v423 = vld [vmem:[#allocation8 + $0x88] sm:$0xf]
    %v424 = vld [vmem:[#allocation8 + $0x8c] sm:$0xf]
    %v425 = vld [vmem:[#allocation8 + $0x90] sm:$0xf]
    %v426 = vld [vmem:[#allocation8 + $0x94] sm:$0xf]
    %v427 = vld [vmem:[#allocation8 + $0x98] sm:$0xf]
    %v428 = vld [vmem:[#allocation8 + $0x9c] sm:$0xf]
    %v429 = vld [vmem:[#allocation8 + $0xa0] sm:$0xf]
    %v430 = vld [vmem:[#allocation8 + $0xa4] sm:$0xf]
    %v431 = vld [vmem:[#allocation8 + $0xa8] sm:$0xf]
    %v432 = vld [vmem:[#allocation8 + $0xac] sm:$0xf]
    %v433 = vld [vmem:[#allocation8 + $0xb0] sm:$0xf]
    %v434 = vld [vmem:[#allocation8 + $0xb4] sm:$0xf]
    %v435 = vld [vmem:[#allocation8 + $0xb8] sm:$0xf]
    %v436 = vld [vmem:[#allocation8 + $0xbc] sm:$0xf]
    %v437 = vld [vmem:[#allocation8 + $0xc0] sm:$0xf]
    %v438 = vld [vmem:[#allocation8 + $0xc4] sm:$0xf]
    %v439 = vld [vmem:[#allocation8 + $0xc8] sm:$0xf]
    %v440 = vld [vmem:[#allocation8 + $0xcc] sm:$0xf]
    %v441 = vld [vmem:[#allocation8 + $0xd0] sm:$0xf]
    %v442 = vld [vmem:[#allocation8 + $0xd4] sm:$0xf]
    %v443 = vld [vmem:[#allocation8 + $0xd8] sm:$0xf]
    %v444 = vld [vmem:[#allocation8 + $0xdc] sm:$0xf]
    %v445 = vld [vmem:[#allocation8 + $0xe0] sm:$0xf]
    %v446 = vld [vmem:[#allocation8 + $0xe4] sm:$0xf]
    %v447 = vld [vmem:[#allocation8 + $0xe8] sm:$0xf]
    %v448 = vld [vmem:[#allocation8 + $0xec] sm:$0xf]
    %v449 = vld [vmem:[#allocation8 + $0xf0] sm:$0xf]
    %v450 = vld [vmem:[#allocation8 + $0xf4] sm:$0xf]
    %v451 = vld [vmem:[#allocation8 + $0xf8] sm:$0xf]
    %v452 = vld [vmem:[#allocation8 + $0xfc] sm:$0xf]
    %v517 = vunpack.c.l.b16 %v389
    %v518 = vunpack.c.l.b16 %v390
    %v519 = vunpack.c.l.b16 %v391
    %v520 = vunpack.c.l.b16 %v392
    %v521 = vunpack.c.l.b16 %v393
    %v522 = vunpack.c.l.b16 %v394
    %v523 = vunpack.c.l.b16 %v395
    %v524 = vunpack.c.l.b16 %v396
    %v525 = vunpack.c.l.b16 %v397
    %v526 = vunpack.c.l.b16 %v398
    %v527 = vunpack.c.l.b16 %v399
    %v528 = vunpack.c.l.b16 %v400
    %v529 = vunpack.c.l.b16 %v401
    %v530 = vunpack.c.l.b16 %v402
    %v531 = vunpack.c.l.b16 %v403
    %v532 = vunpack.c.l.b16 %v404
    %v533 = vunpack.c.l.b16 %v405
    %v534 = vunpack.c.l.b16 %v406
    %v535 = vunpack.c.l.b16 %v407
    %v536 = vunpack.c.l.b16 %v408
    %v537 = vunpack.c.l.b16 %v409
    %v538 = vunpack.c.l.b16 %v410
    %v539 = vunpack.c.l.b16 %v411
    %v540 = vunpack.c.l.b16 %v412
    %v541 = vunpack.c.l.b16 %v413
    %v542 = vunpack.c.l.b16 %v414
    %v543 = vunpack.c.l.b16 %v415
    %v544 = vunpack.c.l.b16 %v416
    %v545 = vunpack.c.l.b16 %v417
    %v546 = vunpack.c.l.b16 %v418
    %v547 = vunpack.c.l.b16 %v419
    %v548 = vunpack.c.l.b16 %v420
    %v549 = vunpack.c.l.b16 %v421
    %v550 = vunpack.c.l.b16 %v422
    %v551 = vunpack.c.l.b16 %v423
    %v552 = vunpack.c.l.b16 %v424
    %v553 = vunpack.c.l.b16 %v425
    %v554 = vunpack.c.l.b16 %v426
    %v555 = vunpack.c.l.b16 %v427
    %v556 = vunpack.c.l.b16 %v428
    %v557 = vunpack.c.l.b16 %v429
    %v558 = vunpack.c.l.b16 %v430
    %v559 = vunpack.c.l.b16 %v431
    %v560 = vunpack.c.l.b16 %v432
    %v561 = vunpack.c.l.b16 %v433
    %v562 = vunpack.c.l.b16 %v434
    %v563 = vunpack.c.l.b16 %v435
    %v564 = vunpack.c.l.b16 %v436
    %v565 = vunpack.c.l.b16 %v437
    %v566 = vunpack.c.l.b16 %v438
    %v567 = vunpack.c.l.b16 %v439
    %v568 = vunpack.c.l.b16 %v440
    %v569 = vunpack.c.l.b16 %v441
    %v570 = vunpack.c.l.b16 %v442
    %v571 = vunpack.c.l.b16 %v443
    %v572 = vunpack.c.l.b16 %v444
    %v573 = vunpack.c.l.b16 %v445
    %v574 = vunpack.c.l.b16 %v446
    %v575 = vunpack.c.l.b16 %v447
    %v576 = vunpack.c.l.b16 %v448
    %v577 = vunpack.c.l.b16 %v449
    %v578 = vunpack.c.l.b16 %v450
    %v579 = vunpack.c.l.b16 %v451
    %v580 = vunpack.c.l.b16 %v452
    %v581 = vpack.c.b16 %v518, %v517
    %v582 = vpack.c.b16 %v520, %v519
    %v583 = vpack.c.b16 %v522, %v521
    %v584 = vpack.c.b16 %v524, %v523
    %v585 = vpack.c.b16 %v526, %v525
    %v586 = vpack.c.b16 %v528, %v527
    %v587 = vpack.c.b16 %v530, %v529
    %v588 = vpack.c.b16 %v532, %v531
    %v589 = vpack.c.b16 %v534, %v533
    %v590 = vpack.c.b16 %v536, %v535
    %v591 = vpack.c.b16 %v538, %v537
    %v592 = vpack.c.b16 %v540, %v539
    %v593 = vpack.c.b16 %v542, %v541
    %v594 = vpack.c.b16 %v544, %v543
    %v595 = vpack.c.b16 %v546, %v545
    %v596 = vpack.c.b16 %v548, %v547
    %v597 = vpack.c.b16 %v550, %v549
    %v598 = vpack.c.b16 %v552, %v551
    %v599 = vpack.c.b16 %v554, %v553
    %v600 = vpack.c.b16 %v556, %v555
    %v601 = vpack.c.b16 %v558, %v557
    %v602 = vpack.c.b16 %v560, %v559
    %v603 = vpack.c.b16 %v562, %v561
    %v604 = vpack.c.b16 %v564, %v563
    %v605 = vpack.c.b16 %v566, %v565
    %v606 = vpack.c.b16 %v568, %v567
    %v607 = vpack.c.b16 %v570, %v569
    %v608 = vpack.c.b16 %v572, %v571
    %v609 = vpack.c.b16 %v574, %v573
    %v610 = vpack.c.b16 %v576, %v575
    %v611 = vpack.c.b16 %v578, %v577
    %v612 = vpack.c.b16 %v580, %v579
    %645 = vmatprep.subr.bf16.mxu0 0
    %646 = vmatpush1.bf16.msra.mxu0 %v581
    %647 = vmatprep.subr.bf16.mxu0 0
    %648 = vmatpush1.bf16.msra.mxu0 %v582
    %649 = vmatprep.subr.bf16.mxu0 0
    %650 = vmatpush1.bf16.msra.mxu0 %v583
    %651 = vmatprep.subr.bf16.mxu0 0
    %652 = vmatpush1.bf16.msra.mxu0 %v584
    %653 = vmatprep.subr.bf16.mxu0 0
    %654 = vmatpush1.bf16.msra.mxu0 %v585
    %655 = vmatprep.subr.bf16.mxu0 0
    %656 = vmatpush1.bf16.msra.mxu0 %v586
    %657 = vmatprep.subr.bf16.mxu0 0
    %658 = vmatpush1.bf16.msra.mxu0 %v587
    %659 = vmatprep.subr.bf16.mxu0 0
    %660 = vmatpush1.bf16.msra.mxu0 %v588
    %661 = vmatprep.subr.bf16.mxu0 0
    %662 = vmatpush1.bf16.msra.mxu0 %v589
    %663 = vmatprep.subr.bf16.mxu0 0
    %664 = vmatpush1.bf16.msra.mxu0 %v590
    %665 = vmatprep.subr.bf16.mxu0 0
    %666 = vmatpush1.bf16.msra.mxu0 %v591
    %667 = vmatprep.subr.bf16.mxu0 0
    %668 = vmatpush1.bf16.msra.mxu0 %v592
    %669 = vmatprep.subr.bf16.mxu0 0
    %670 = vmatpush1.bf16.msra.mxu0 %v593
    %671 = vmatprep.subr.bf16.mxu0 0
    %672 = vmatpush1.bf16.msra.mxu0 %v594
    %673 = vmatprep.subr.bf16.mxu0 0
    %674 = vmatpush1.bf16.msra.mxu0 %v595
    %675 = vmatprep.subr.bf16.mxu0 0
    %676 = vmatpush1.bf16.msra.mxu0 %v596
    %677 = vmatprep.mubr.bf16.mxu0 %v386
    %678 = vmatmul.mubr.bf16.gmra.mrb[0].mxu0 %v385
    %v679 = vpop.f32.mrb[0].mxu0
    %v680 = vadd.f32 0.0, %v679
    %v681 = vpop.f32.mrb[0].mxu0
    %v682 = vpop.f32.mrb[0].mxu0
    %v683 = vpop.f32.mrb[0].mxu0
    %684 = vdwg.mxu0
    %685 = vmatprep.subr.bf16.mxu0 0
    %686 = vmatpush1.bf16.msra.mxu0 %v597
    %687 = vmatprep.subr.bf16.mxu0 0
    %688 = vmatpush1.bf16.msra.mxu0 %v598
    %689 = vmatprep.subr.bf16.mxu0 0
    %690 = vmatpush1.bf16.msra.mxu0 %v599
    %691 = vmatprep.subr.bf16.mxu0 0
    %692 = vmatpush1.bf16.msra.mxu0 %v600
    %693 = vmatprep.subr.bf16.mxu0 0
    %694 = vmatpush1.bf16.msra.mxu0 %v601
    %695 = vmatprep.subr.bf16.mxu0 0
    %696 = vmatpush1.bf16.msra.mxu0 %v602
    %697 = vmatprep.subr.bf16.mxu0 0
    %698 = vmatpush1.bf16.msra.mxu0 %v603
    %699 = vmatprep.subr.bf16.mxu0 0
    %700 = vmatpush1.bf16.msra.mxu0 %v604
    %701 = vmatprep.subr.bf16.mxu0 0
    %702 = vmatpush1.bf16.msra.mxu0 %v605
    %703 = vmatprep.subr.bf16.mxu0 0
    %704 = vmatpush1.bf16.msra.mxu0 %v606
    %705 = vmatprep.subr.bf16.mxu0 0
    %706 = vmatpush1.bf16.msra.mxu0 %v607
    %707 = vmatprep.subr.bf16.mxu0 0
    %708 = vmatpush1.bf16.msra.mxu0 %v608
    %709 = vmatprep.subr.bf16.mxu0 0
    %710 = vmatpush1.bf16.msra.mxu0 %v609
    %711 = vmatprep.subr.bf16.mxu0 0
    %712 = vmatpush1.bf16.msra.mxu0 %v610
    %713 = vmatprep.subr.bf16.mxu0 0
    %714 = vmatpush1.bf16.msra.mxu0 %v611
    %715 = vmatprep.subr.bf16.mxu0 0
    %716 = vmatpush1.bf16.msra.mxu0 %v612
    %717 = vmatprep.mubr.bf16.mxu0 %v388
    %718 = vmatmul.mubr.bf16.gmra.mrb[0].mxu0 %v387
    %v719 = vpop.f32.mrb[0].mxu0
    %v720 = vadd.f32 %v680, %v719
    %v721 = vpop.f32.mrb[0].mxu0
    %v722 = vpop.f32.mrb[0].mxu0
    %v723 = vpop.f32.mrb[0].mxu0
    %724 = vdwg.mxu0
    %v725 = vadd.f32 %v384, %v720
    %726 = vst [vmem:[#allocation2] sm:$0xf] %v725
    // Predicated region
    $region38: #{tpu_custom_call.1} parent=1 // pred_check
      %p727 = pneg %p61
    $region39: #{tpu_custom_call.1} parent=1 // pred_check_branch
      %729 = sbr.rel (%p727) target = $region41
    $region40: #{tpu_custom_call.1} parent=1 // pred_region
      %v730 = vld [vmem:[#allocation2] sm:$0xf]
      %v731 = vld [vmem:[%s4] sm:$0x1]
      %v733 = vlaneseq
      %v734 = vshrl.u32 %v733, 7
      %v735 = vsub.s32 0, %v734
      %v736 = vrot.slane %v731, %v735
      %v738 = vadd.f32 %v730, %v736
      %739 = vst [vmem:[#allocation9] sm:$0xf] %v738
    $region41: #{tpu_custom_call.1} parent=1 // pred_fallthru
      _
    // Predicated region
    $region42: #{tpu_custom_call.1} parent=1 // pred_check
      _
    $region43: #{tpu_custom_call.1} parent=1 // pred_check_branch
      %741 = sbr.rel (0) target = $region45
    $region44: #{tpu_custom_call.1} parent=1 // pred_region
      %s743 = ssub.s32 64, 64
      %744 = vsyncadd [#allocation5], %s743
      %s746 = sshll.u32 [#allocation9], 4
      %s747 = int_to_ptr.vmem [resolvable:$true] %s746
      %749 = dma.vmem_to_hbm [thread:$0]  %s747, 64, %s5, [#allocation5]
    $region45: #{tpu_custom_call.1} parent=1 // pred_fallthru
      _
    // Predicated region
    $region46: #{tpu_custom_call.1} parent=1 // pred_check
      _
    $region47: #{tpu_custom_call.1} parent=1 // pred_check_branch
      %751 = sbr.rel (0) target = $region49
    $region48: #{tpu_custom_call.1} parent=1 // pred_region
      %752 = dma.done [#allocation5], 64
    $region49: #{tpu_custom_call.1} parent=1 // pred_fallthru
      _
    %753 = vsyncpa [#allocation4], 1
    %754 = vsyncpa [#allocation7], 1
    %755 = vsyncpa [#allocation5], 1

// kernel: tpu_custom_call.1
$region0: #{tpu_custom_call.1}
  #allocation0 [shape = 'u32[]', space=smem, size = 0x4, offset = 0x4, fixed_abs, tag = 'smem constant byte address 0x4 - core index']
  #allocation1 [shape = 'u32[144,128]{1,0:T(1,128)}', space=vmem, size = 0x12000, scoped, tag = 'internal scratch']
  #allocation2 [shape = 'f32[4,128]{1,0:T(4,128)}', space=vmem, size = 0x800, scoped, tag = 'scratch operand']
  %s0 = inlined_call_operand.hbm [shape: f32[4,128], index: 0, kind: input, shape index: {}]
  %s1 = inlined_call_operand.hbm [shape: bf16[128,512], index: 1, kind: input, shape index: {}]
  %s2 = inlined_call_operand.vmem [shape: f32[1,512], index: 2, kind: input, shape index: {}]
  %s3 = inlined_call_operand.hbm [shape: bf16[512,128], index: 3, kind: input, shape index: {}]
  %s4 = inlined_call_operand.vmem [shape: f32[1,128], index: 4, kind: input, shape index: {}]
  %s5 = inlined_call_operand.hbm [shape: f32[4,128], index: 5, kind: output, shape index: {}]
  %s6 = sld [smem:[#allocation0]]
  $region50: #{tpu_custom_call.1} parent=0
    _
  %s8 = ssub.s32 1, %s6
  %s9 = scalar_select 0, %s8, %s6
  $region1: #{tpu_custom_call.1} parent=0
    #allocation3 [shape = 'u8[2048]{0}', space=vmem, size = 0x800, scoped, tag = 'input window, operand 0, single buffered']
    #allocation4 [shape = 's32[1]{0}', space=sflag, size = 0x4, scoped, tag = 'scoped memory for tpu_custom_call.1']
    #allocation5 [shape = 's32[1]{0}', space=sflag, size = 0x4, scoped, tag = 'scoped memory for tpu_custom_call.1']
    #allocation6 [shape = 'u8[131072]{0}', space=vmem, size = 0x20000, scoped, tag = 'input window, operand 1, single buffered']
    #allocation7 [shape = 's32[1]{0}', space=sflag, size = 0x4, scoped, tag = 'scoped memory for tpu_custom_call.1']
    #allocation8 [shape = 'u8[131072]{0}', space=vmem, size = 0x20000, scoped, tag = 'input window, operand 3, single buffered']
    #allocation9 [shape = 'u8[2048]{0}', space=vmem, size = 0x800, scoped, tag = 'output window, operand 0, single buffered']
    %10 = vsyncpa [#allocation4], 0
    %11 = vsyncpa [#allocation7], 0
    %12 = vsyncpa [#allocation5], 0
    // Predicated region
    $region2: #{tpu_custom_call.1} parent=1 // pred_check
      _
    $region3: #{tpu_custom_call.1} parent=1 // pred_check_branch
      %14 = sbr.rel (0) target = $region5
    $region4: #{tpu_custom_call.1} parent=1 // pred_region
      %s16 = ssub.s32 64, 64
      %17 = vsyncadd [#allocation4], %s16
      %s19 = sshll.u32 [#allocation3], 4
      %s20 = int_to_ptr.vmem [resolvable:$true] %s19
      %22 = dma.hbm_to_vmem [thread:$0]  %s0, 64, %s20, [#allocation4]
    $region5: #{tpu_custom_call.1} parent=1 // pred_fallthru
      _
    // Predicated region
    $region6: #{tpu_custom_call.1} parent=1 // pred_check
      _
    $region7: #{tpu_custom_call.1} parent=1 // pred_check_branch
      %24 = sbr.rel (0) target = $region9
    $region8: #{tpu_custom_call.1} parent=1 // pred_region
      %s26 = ssub.s32 4096, 4096
      %27 = vsyncadd [#allocation7], %s26
      %s28 = sshll.u32 [#allocation6], 4
      %s29 = int_to_ptr.vmem [resolvable:$true] %s28
      %34 = dma.hbm_to_vmem [thread:$0]  %s1, 4096, %s29, [#allocation7], 256, 256, 16
    $region9: #{tpu_custom_call.1} parent=1 // pred_fallthru
      _
    // Predicated region
    $region10: #{tpu_custom_call.1} parent=1 // pred_check
      _
    $region11: #{tpu_custom_call.1} parent=1 // pred_check_branch
      %36 = sbr.rel (0) target = $region13
    $region12: #{tpu_custom_call.1} parent=1 // pred_region
      _
    $region13: #{tpu_custom_call.1} parent=1 // pred_fallthru
      _
    // Predicated region
    $region14: #{tpu_custom_call.1} parent=1 // pred_check
      _
    $region15: #{tpu_custom_call.1} parent=1 // pred_check_branch
      %38 = sbr.rel (0) target = $region17
    $region16: #{tpu_custom_call.1} parent=1 // pred_region
      %s40 = ssub.s32 4096, 4096
      %41 = vsyncadd [#allocation7], %s40
      %s42 = sshll.u32 [#allocation8], 4
      %s43 = int_to_ptr.vmem [resolvable:$true] %s42
      %48 = dma.hbm_to_vmem [thread:$0]  %s3, 4096, %s43, [#allocation7], 64, 64, 4
    $region17: #{tpu_custom_call.1} parent=1 // pred_fallthru
      _
    // Predicated region
    $region18: #{tpu_custom_call.1} parent=1 // pred_check
      _
    $region19: #{tpu_custom_call.1} parent=1 // pred_check_branch
      %50 = sbr.rel (0) target = $region21
    $region20: #{tpu_custom_call.1} parent=1 // pred_region
      _
    $region21: #{tpu_custom_call.1} parent=1 // pred_fallthru
      _
    // Predicated region
    $region22: #{tpu_custom_call.1} parent=1 // pred_check
      _
    $region23: #{tpu_custom_call.1} parent=1 // pred_check_branch
      %52 = sbr.rel (0) target = $region25
    $region24: #{tpu_custom_call.1} parent=1 // pred_region
      %53 = dma.done [#allocation4], 64
    $region25: #{tpu_custom_call.1} parent=1 // pred_fallthru
      _
    // Predicated region
    $region26: #{tpu_custom_call.1} parent=1 // pred_check
      _
    $region27: #{tpu_custom_call.1} parent=1 // pred_check_branch
      %55 = sbr.rel (0) target = $region29
    $region28: #{tpu_custom_call.1} parent=1 // pred_region
      %56 = dma.done [#allocation7], 4096
    $region29: #{tpu_custom_call.1} parent=1 // pred_fallthru
      _
    // Predicated region
    $region30: #{tpu_custom_call.1} parent=1 // pred_check
      _
    $region31: #{tpu_custom_call.1} parent=1 // pred_check_branch
      %58 = sbr.rel (0) target = $region33
    $region32: #{tpu_custom_call.1} parent=1 // pred_region
      %59 = dma.done [#allocation7], 4096
    $region33: #{tpu_custom_call.1} parent=1 // pred_fallthru
      _
    %p61 = scmp.eq.s32.totalorder 0, 0
    // Predicated region
    $region34: #{tpu_custom_call.1} parent=1 // pred_check
      %p62 = pneg %p61
    $region35: #{tpu_custom_call.1} parent=1 // pred_check_branch
      %64 = sbr.rel (%p62) target = $region37
    $region36: #{tpu_custom_call.1} parent=1 // pred_region
      %65 = vst [vmem:[#allocation2] sm:$0xf] 0.0
    $region37: #{tpu_custom_call.1} parent=1 // pred_fallthru
      _
    %v66 = vld [vmem:[#allocation3] sm:$0xf]
    %v67 = vpack.c.bf16 %v66, %v66
    %v68 = vld [vmem:[#allocation6] sm:$0xff]
    %v69 = vld [vmem:[#allocation6 + $0x8] sm:$0xff]
    %v70 = vld [vmem:[#allocation6 + $0x10] sm:$0xff]
    %v71 = vld [vmem:[#allocation6 + $0x18] sm:$0xff]
    %v72 = vld [vmem:[#allocation6 + $0x20] sm:$0xff]
    %v73 = vld [vmem:[#allocation6 + $0x28] sm:$0xff]
    %v74 = vld [vmem:[#allocation6 + $0x30] sm:$0xff]
    %v75 = vld [vmem:[#allocation6 + $0x38] sm:$0xff]
    %v76 = vld [vmem:[#allocation6 + $0x40] sm:$0xff]
    %v77 = vld [vmem:[#allocation6 + $0x48] sm:$0xff]
    %v78 = vld [vmem:[#allocation6 + $0x50] sm:$0xff]
    %v79 = vld [vmem:[#allocation6 + $0x58] sm:$0xff]
    %v80 = vld [vmem:[#allocation6 + $0x60] sm:$0xff]
    %v81 = vld [vmem:[#allocation6 + $0x68] sm:$0xff]
    %v82 = vld [vmem:[#allocation6 + $0x70] sm:$0xff]
    %v83 = vld [vmem:[#allocation6 + $0x78] sm:$0xff]
    %v84 = vld [vmem:[#allocation6 + $0x80] sm:$0xff]
    %v85 = vld [vmem:[#allocation6 + $0x88] sm:$0xff]
    %v86 = vld [vmem:[#allocation6 + $0x90] sm:$0xff]
    %v87 = vld [vmem:[#allocation6 + $0x98] sm:$0xff]
    %v88 = vld [vmem:[#allocation6 + $0xa0] sm:$0xff]
    %v89 = vld [vmem:[#allocation6 + $0xa8] sm:$0xff]
    %v90 = vld [vmem:[#allocation6 + $0xb0] sm:$0xff]
    %v91 = vld [vmem:[#allocation6 + $0xb8] sm:$0xff]
    %v92 = vld [vmem:[#allocation6 + $0xc0] sm:$0xff]
    %v93 = vld [vmem:[#allocation6 + $0xc8] sm:$0xff]
    %v94 = vld [vmem:[#allocation6 + $0xd0] sm:$0xff]
    %v95 = vld [vmem:[#allocation6 + $0xd8] sm:$0xff]
    %v96 = vld [vmem:[#allocation6 + $0xe0] sm:$0xff]
    %v97 = vld [vmem:[#allocation6 + $0xe8] sm:$0xff]
    %v98 = vld [vmem:[#allocation6 + $0xf0] sm:$0xff]
    %v99 = vld [vmem:[#allocation6 + $0xf8] sm:$0xff]
    %v100 = vld [vmem:[%s2] sm:$0xf]
    %v102 = vlaneseq
    %v103 = vshrl.u32 %v102, 7
    %v104 = vsub.s32 0, %v103
    %v105 = vrot.slane %v100, %v104
    %v106 = vlaneseq
    %v107 = vshrl.u32 %v106, 7
    %v108 = vsub.s32 1, %v107
    %v109 = vrot.slane %v100, %v108
    %v110 = vlaneseq
    %v111 = vshrl.u32 %v110, 7
    %v112 = vsub.s32 2, %v111
    %v113 = vrot.slane %v100, %v112
    %v114 = vlaneseq
    %v115 = vshrl.u32 %v114, 7
    %v116 = vsub.s32 3, %v115
    %v117 = vrot.slane %v100, %v116
    %v154 = vunpack.c.l.b16 %v68
    %v155 = vunpack.c.h.b16 %v68
    %v156 = vunpack.c.l.b16 %v69
    %v157 = vunpack.c.h.b16 %v69
    %v158 = vunpack.c.l.b16 %v70
    %v159 = vunpack.c.h.b16 %v70
    %v160 = vunpack.c.l.b16 %v71
    %v161 = vunpack.c.h.b16 %v71
    %v162 = vunpack.c.l.b16 %v72
    %v163 = vunpack.c.h.b16 %v72
    %v164 = vunpack.c.l.b16 %v73
    %v165 = vunpack.c.h.b16 %v73
    %v166 = vunpack.c.l.b16 %v74
    %v167 = vunpack.c.h.b16 %v74
    %v168 = vunpack.c.l.b16 %v75
    %v169 = vunpack.c.h.b16 %v75
    %v170 = vunpack.c.l.b16 %v76
    %v171 = vunpack.c.h.b16 %v76
    %v172 = vunpack.c.l.b16 %v77
    %v173 = vunpack.c.h.b16 %v77
    %v174 = vunpack.c.l.b16 %v78
    %v175 = vunpack.c.h.b16 %v78
    %v176 = vunpack.c.l.b16 %v79
    %v177 = vunpack.c.h.b16 %v79
    %v178 = vunpack.c.l.b16 %v80
    %v179 = vunpack.c.h.b16 %v80
    %v180 = vunpack.c.l.b16 %v81
    %v181 = vunpack.c.h.b16 %v81
    %v182 = vunpack.c.l.b16 %v82
    %v183 = vunpack.c.h.b16 %v82
    %v184 = vunpack.c.l.b16 %v83
    %v185 = vunpack.c.h.b16 %v83
    %v186 = vunpack.c.l.b16 %v84
    %v187 = vunpack.c.h.b16 %v84
    %v188 = vunpack.c.l.b16 %v85
    %v189 = vunpack.c.h.b16 %v85
    %v190 = vunpack.c.l.b16 %v86
    %v191 = vunpack.c.h.b16 %v86
    %v192 = vunpack.c.l.b16 %v87
    %v193 = vunpack.c.h.b16 %v87
    %v194 = vunpack.c.l.b16 %v88
    %v195 = vunpack.c.h.b16 %v88
    %v196 = vunpack.c.l.b16 %v89
    %v197 = vunpack.c.h.b16 %v89
    %v198 = vunpack.c.l.b16 %v90
    %v199 = vunpack.c.h.b16 %v90
    %v200 = vunpack.c.l.b16 %v91
    %v201 = vunpack.c.h.b16 %v91
    %v202 = vunpack.c.l.b16 %v92
    %v203 = vunpack.c.h.b16 %v92
    %v204 = vunpack.c.l.b16 %v93
    %v205 = vunpack.c.h.b16 %v93
    %v206 = vunpack.c.l.b16 %v94
    %v207 = vunpack.c.h.b16 %v94
    %v208 = vunpack.c.l.b16 %v95
    %v209 = vunpack.c.h.b16 %v95
    %v210 = vunpack.c.l.b16 %v96
    %v211 = vunpack.c.h.b16 %v96
    %v212 = vunpack.c.l.b16 %v97
    %v213 = vunpack.c.h.b16 %v97
    %v214 = vunpack.c.l.b16 %v98
    %v215 = vunpack.c.h.b16 %v98
    %v216 = vunpack.c.l.b16 %v99
    %v217 = vunpack.c.h.b16 %v99
    %v218 = vpack.c.b16 %v158, %v154
    %v219 = vpack.c.b16 %v159, %v155
    %v220 = vpack.c.b16 %v160, %v156
    %v221 = vpack.c.b16 %v161, %v157
    %v222 = vpack.c.b16 %v166, %v162
    %v223 = vpack.c.b16 %v167, %v163
    %v224 = vpack.c.b16 %v168, %v164
    %v225 = vpack.c.b16 %v169, %v165
    %v226 = vpack.c.b16 %v174, %v170
    %v227 = vpack.c.b16 %v175, %v171
    %v228 = vpack.c.b16 %v176, %v172
    %v229 = vpack.c.b16 %v177, %v173
    %v230 = vpack.c.b16 %v182, %v178
    %v231 = vpack.c.b16 %v183, %v179
    %v232 = vpack.c.b16 %v184, %v180
    %v233 = vpack.c.b16 %v185, %v181
    %v234 = vpack.c.b16 %v190, %v186
    %v235 = vpack.c.b16 %v191, %v187
    %v236 = vpack.c.b16 %v192, %v188
    %v237 = vpack.c.b16 %v193, %v189
    %v238 = vpack.c.b16 %v198, %v194
    %v239 = vpack.c.b16 %v199, %v195
    %v240 = vpack.c.b16 %v200, %v196
    %v241 = vpack.c.b16 %v201, %v197
    %v242 = vpack.c.b16 %v206, %v202
    %v243 = vpack.c.b16 %v207, %v203
    %v244 = vpack.c.b16 %v208, %v204
    %v245 = vpack.c.b16 %v209, %v205
    %v246 = vpack.c.b16 %v214, %v210
    %v247 = vpack.c.b16 %v215, %v211
    %v248 = vpack.c.b16 %v216, %v212
    %v249 = vpack.c.b16 %v217, %v213
    %282 = vmatprep.subr.bf16.mxu0 %v219
    %283 = vmatpush1.bf16.msra.mxu0 %v218
    %284 = vmatprep.subr.bf16.mxu0 %v223
    %285 = vmatpush1.bf16.msra.mxu0 %v222
    %286 = vmatprep.subr.bf16.mxu0 %v227
    %287 = vmatpush1.bf16.msra.mxu0 %v226
    %288 = vmatprep.subr.bf16.mxu0 %v231
    %289 = vmatpush1.bf16.msra.mxu0 %v230
    %290 = vmatprep.subr.bf16.mxu0 %v235
    %291 = vmatpush1.bf16.msra.mxu0 %v234
    %292 = vmatprep.subr.bf16.mxu0 %v239
    %293 = vmatpush1.bf16.msra.mxu0 %v238
    %294 = vmatprep.subr.bf16.mxu0 %v243
    %295 = vmatpush1.bf16.msra.mxu0 %v242
    %296 = vmatprep.subr.bf16.mxu0 %v247
    %297 = vmatpush1.bf16.msra.mxu0 %v246
    %298 = vmatprep.subr.bf16.mxu0 0
    %299 = vmatpush1.bf16.msra.mxu0 0
    %300 = vmatprep.subr.bf16.mxu0 0
    %301 = vmatpush1.bf16.msra.mxu0 0
    %302 = vmatprep.subr.bf16.mxu0 0
    %303 = vmatpush1.bf16.msra.mxu0 0
    %304 = vmatprep.subr.bf16.mxu0 0
    %305 = vmatpush1.bf16.msra.mxu0 0
    %306 = vmatprep.subr.bf16.mxu0 0
    %307 = vmatpush1.bf16.msra.mxu0 0
    %308 = vmatprep.subr.bf16.mxu0 0
    %309 = vmatpush1.bf16.msra.mxu0 0
    %310 = vmatprep.subr.bf16.mxu0 0
    %311 = vmatpush1.bf16.msra.mxu0 0
    %312 = vmatprep.subr.bf16.mxu0 0
    %313 = vmatpush1.bf16.msra.mxu0 0
    %314 = vmatprep.mubr.bf16.mxu0 0
    %315 = vmatmul.mubr.bf16.gmra.mrb[0].mxu0 %v67
    %v316 = vpop.f32.mrb[0].mxu0
    %v317 = vadd.f32 %v105, %v316
    %v318 = vpop.f32.mrb[0].mxu0
    %v319 = vadd.f32 %v109, %v318
    %v320 = vpop.f32.mrb[0].mxu0
    %v321 = vpop.f32.mrb[0].mxu0
    %322 = vdwg.mxu0
    %323 = vmatprep.subr.bf16.mxu0 %v221
    %324 = vmatpush1.bf16.msra.mxu0 %v220
    %325 = vmatprep.subr.bf16.mxu0 %v225
    %326 = vmatpush1.bf16.msra.mxu0 %v224
    %327 = vmatprep.subr.bf16.mxu0 %v229
    %328 = vmatpush1.bf16.msra.mxu0 %v228
    %329 = vmatprep.subr.bf16.mxu0 %v233
    %330 = vmatpush1.bf16.msra.mxu0 %v232
    %331 = vmatprep.subr.bf16.mxu0 %v237
    %332 = vmatpush1.bf16.msra.mxu0 %v236
    %333 = vmatprep.subr.bf16.mxu0 %v241
    %334 = vmatpush1.bf16.msra.mxu0 %v240
    %335 = vmatprep.subr.bf16.mxu0 %v245
    %336 = vmatpush1.bf16.msra.mxu0 %v244
    %337 = vmatprep.subr.bf16.mxu0 %v249
    %338 = vmatpush1.bf16.msra.mxu0 %v248
    %339 = vmatprep.subr.bf16.mxu0 0
    %340 = vmatpush1.bf16.msra.mxu0 0
    %341 = vmatprep.subr.bf16.mxu0 0
    %342 = vmatpush1.bf16.msra.mxu0 0
    %343 = vmatprep.subr.bf16.mxu0 0
    %344 = vmatpush1.bf16.msra.mxu0 0
    %345 = vmatprep.subr.bf16.mxu0 0
    %346 = vmatpush1.bf16.msra.mxu0 0
    %347 = vmatprep.subr.bf16.mxu0 0
    %348 = vmatpush1.bf16.msra.mxu0 0
    %349 = vmatprep.subr.bf16.mxu0 0
    %350 = vmatpush1.bf16.msra.mxu0 0
    %351 = vmatprep.subr.bf16.mxu0 0
    %352 = vmatpush1.bf16.msra.mxu0 0
    %353 = vmatprep.subr.bf16.mxu0 0
    %354 = vmatpush1.bf16.msra.mxu0 0
    %355 = vmatprep.mubr.bf16.mxu0 0
    %356 = vmatmul.mubr.bf16.gmra.mrb[0].mxu0 %v67
    %v357 = vpop.f32.mrb[0].mxu0
    %v358 = vadd.f32 %v113, %v357
    %v359 = vpop.f32.mrb[0].mxu0
    %v360 = vadd.f32 %v117, %v359
    %v361 = vpop.f32.mrb[0].mxu0
    %v362 = vpop.f32.mrb[0].mxu0
    %363 = vdwg.mxu0
    %v364 = vmul.f32 %v317, 0.5
    %v365 = vmul.f32 %v319, 0.5
    %v366 = vmul.f32 %v358, 0.5
    %v367 = vmul.f32 %v360, 0.5
    %v368 = vmul.f32 %v317, 0.70710677
    %v369 = vmul.f32 %v319, 0.70710677
    %v370 = vmul.f32 %v358, 0.70710677
    %v371 = vmul.f32 %v360, 0.70710677
    %v372 = verf.f32.pop %v368
    %v373 = verf.f32.pop %v369
    %v374 = verf.f32.pop %v370
    %v375 = verf.f32.pop %v371
    %v376 = vadd.f32 %v372, 1.0
    %v377 = vadd.f32 %v373, 1.0
    %v378 = vadd.f32 %v374, 1.0
    %v379 = vadd.f32 %v375, 1.0
    %v380 = vmul.f32 %v364, %v376
    %v381 = vmul.f32 %v365, %v377
    %v382 = vmul.f32 %v366, %v378
    %v383 = vmul.f32 %v367, %v379
    %v384 = vld [vmem:[#allocation2] sm:$0xf]
    %v385 = vpack.c.bf16 %v380, %v380
    %v386 = vpack.c.bf16 %v381, %v381
    %v387 = vpack.c.bf16 %v382, %v382
    %v388 = vpack.c.bf16 %v383, %v383
    %v389 = vld [vmem:[#allocation8] sm:$0xf]
    %v390 = vld [vmem:[#allocation8 + $0x4] sm:$0xf]
    %v391 = vld [vmem:[#allocation8 + $0x8] sm:$0xf]
    %v392 = vld [vmem:[#allocation8 + $0xc] sm:$0xf]
    %v393 = vld [vmem:[#allocation8 + $0x10] sm:$0xf]
    %v394 = vld [vmem:[#allocation8 + $0x14] sm:$0xf]
    %v395 = vld [vmem:[#allocation8 + $0x18] sm:$0xf]
    %v396 = vld [vmem:[#allocation8 + $0x1c] sm:$0xf]
    %v397 = vld [vmem:[#allocation8 + $0x20] sm:$0xf]
    %v398 = vld [vmem:[#allocation8 + $0x24] sm:$0xf]
    %v399 = vld [vmem:[#allocation8 + $0x28] sm:$0xf]
    %v400 = vld [vmem:[#allocation8 + $0x2c] sm:$0xf]
    %v401 = vld [vmem:[#allocation8 + $0x30] sm:$0xf]
    %v402 = vld [vmem:[#allocation8 + $0x34] sm:$0xf]
    %v403 = vld [vmem:[#allocation8 + $0x38] sm:$0xf]
    %v404 = vld [vmem:[#allocation8 + $0x3c] sm:$0xf]
    %v405 = vld [vmem:[#allocation8 + $0x40] sm:$0xf]
    %v406 = vld [vmem:[#allocation8 + $0x44] sm:$0xf]
    %v407 = vld [vmem:[#allocation8 + $0x48] sm:$0xf]
    %v408 = vld [vmem:[#allocation8 + $0x4c] sm:$0xf]
    %v409 = vld [vmem:[#allocation8 + $0x50] sm:$0xf]
    %v410 = vld [vmem:[#allocation8 + $0x54] sm:$0xf]
    %v411 = vld [vmem:[#allocation8 + $0x58] sm:$0xf]
    %v412 = vld [vmem:[#allocation8 + $0x5c] sm:$0xf]
    %v413 = vld [vmem:[#allocation8 + $0x60] sm:$0xf]
    %v414 = vld [vmem:[#allocation8 + $0x64] sm:$0xf]
    %v415 = vld [vmem:[#allocation8 + $0x68] sm:$0xf]
    %v416 = vld [vmem:[#allocation8 + $0x6c] sm:$0xf]
    %v417 = vld [vmem:[#allocation8 + $0x70] sm:$0xf]
    %v418 = vld [vmem:[#allocation8 + $0x74] sm:$0xf]
    %v419 = vld [vmem:[#allocation8 + $0x78] sm:$0xf]
    %v420 = vld [vmem:[#allocation8 + $0x7c] sm:$0xf]
    %v421 = vld [vmem:[#allocation8 + $0x80] sm:$0xf]
    %v422 = vld [vmem:[#allocation8 + $0x84] sm:$0xf]
    %v423 = vld [vmem:[#allocation8 + $0x88] sm:$0xf]
    %v424 = vld [vmem:[#allocation8 + $0x8c] sm:$0xf]
    %v425 = vld [vmem:[#allocation8 + $0x90] sm:$0xf]
    %v426 = vld [vmem:[#allocation8 + $0x94] sm:$0xf]
    %v427 = vld [vmem:[#allocation8 + $0x98] sm:$0xf]
    %v428 = vld [vmem:[#allocation8 + $0x9c] sm:$0xf]
    %v429 = vld [vmem:[#allocation8 + $0xa0] sm:$0xf]
    %v430 = vld [vmem:[#allocation8 + $0xa4] sm:$0xf]
    %v431 = vld [vmem:[#allocation8 + $0xa8] sm:$0xf]
    %v432 = vld [vmem:[#allocation8 + $0xac] sm:$0xf]
    %v433 = vld [vmem:[#allocation8 + $0xb0] sm:$0xf]
    %v434 = vld [vmem:[#allocation8 + $0xb4] sm:$0xf]
    %v435 = vld [vmem:[#allocation8 + $0xb8] sm:$0xf]
    %v436 = vld [vmem:[#allocation8 + $0xbc] sm:$0xf]
    %v437 = vld [vmem:[#allocation8 + $0xc0] sm:$0xf]
    %v438 = vld [vmem:[#allocation8 + $0xc4] sm:$0xf]
    %v439 = vld [vmem:[#allocation8 + $0xc8] sm:$0xf]
    %v440 = vld [vmem:[#allocation8 + $0xcc] sm:$0xf]
    %v441 = vld [vmem:[#allocation8 + $0xd0] sm:$0xf]
    %v442 = vld [vmem:[#allocation8 + $0xd4] sm:$0xf]
    %v443 = vld [vmem:[#allocation8 + $0xd8] sm:$0xf]
    %v444 = vld [vmem:[#allocation8 + $0xdc] sm:$0xf]
    %v445 = vld [vmem:[#allocation8 + $0xe0] sm:$0xf]
    %v446 = vld [vmem:[#allocation8 + $0xe4] sm:$0xf]
    %v447 = vld [vmem:[#allocation8 + $0xe8] sm:$0xf]
    %v448 = vld [vmem:[#allocation8 + $0xec] sm:$0xf]
    %v449 = vld [vmem:[#allocation8 + $0xf0] sm:$0xf]
    %v450 = vld [vmem:[#allocation8 + $0xf4] sm:$0xf]
    %v451 = vld [vmem:[#allocation8 + $0xf8] sm:$0xf]
    %v452 = vld [vmem:[#allocation8 + $0xfc] sm:$0xf]
    %v517 = vunpack.c.l.b16 %v389
    %v518 = vunpack.c.l.b16 %v390
    %v519 = vunpack.c.l.b16 %v391
    %v520 = vunpack.c.l.b16 %v392
    %v521 = vunpack.c.l.b16 %v393
    %v522 = vunpack.c.l.b16 %v394
    %v523 = vunpack.c.l.b16 %v395
    %v524 = vunpack.c.l.b16 %v396
    %v525 = vunpack.c.l.b16 %v397
    %v526 = vunpack.c.l.b16 %v398
    %v527 = vunpack.c.l.b16 %v399
    %v528 = vunpack.c.l.b16 %v400
    %v529 = vunpack.c.l.b16 %v401
    %v530 = vunpack.c.l.b16 %v402
    %v531 = vunpack.c.l.b16 %v403
    %v532 = vunpack.c.l.b16 %v404
    %v533 = vunpack.c.l.b16 %v405
    %v534 = vunpack.c.l.b16 %v406
    %v535 = vunpack.c.l.b16 %v407
    %v536 = vunpack.c.l.b16 %v408
    %v537 = vunpack.c.l.b16 %v409
    %v538 = vunpack.c.l.b16 %v410
    %v539 = vunpack.c.l.b16 %v411
    %v540 = vunpack.c.l.b16 %v412
    %v541 = vunpack.c.l.b16 %v413
    %v542 = vunpack.c.l.b16 %v414
    %v543 = vunpack.c.l.b16 %v415
    %v544 = vunpack.c.l.b16 %v416
    %v545 = vunpack.c.l.b16 %v417
    %v546 = vunpack.c.l.b16 %v418
    %v547 = vunpack.c.l.b16 %v419
    %v548 = vunpack.c.l.b16 %v420
    %v549 = vunpack.c.l.b16 %v421
    %v550 = vunpack.c.l.b16 %v422
    %v551 = vunpack.c.l.b16 %v423
    %v552 = vunpack.c.l.b16 %v424
    %v553 = vunpack.c.l.b16 %v425
    %v554 = vunpack.c.l.b16 %v426
    %v555 = vunpack.c.l.b16 %v427
    %v556 = vunpack.c.l.b16 %v428
    %v557 = vunpack.c.l.b16 %v429
    %v558 = vunpack.c.l.b16 %v430
    %v559 = vunpack.c.l.b16 %v431
    %v560 = vunpack.c.l.b16 %v432
    %v561 = vunpack.c.l.b16 %v433
    %v562 = vunpack.c.l.b16 %v434
    %v563 = vunpack.c.l.b16 %v435
    %v564 = vunpack.c.l.b16 %v436
    %v565 = vunpack.c.l.b16 %v437
    %v566 = vunpack.c.l.b16 %v438
    %v567 = vunpack.c.l.b16 %v439
    %v568 = vunpack.c.l.b16 %v440
    %v569 = vunpack.c.l.b16 %v441
    %v570 = vunpack.c.l.b16 %v442
    %v571 = vunpack.c.l.b16 %v443
    %v572 = vunpack.c.l.b16 %v444
    %v573 = vunpack.c.l.b16 %v445
    %v574 = vunpack.c.l.b16 %v446
    %v575 = vunpack.c.l.b16 %v447
    %v576 = vunpack.c.l.b16 %v448
    %v577 = vunpack.c.l.b16 %v449
    %v578 = vunpack.c.l.b16 %v450
    %v579 = vunpack.c.l.b16 %v451
    %v580 = vunpack.c.l.b16 %v452
    %v581 = vpack.c.b16 %v518, %v517
    %v582 = vpack.c.b16 %v520, %v519
    %v583 = vpack.c.b16 %v522, %v521
    %v584 = vpack.c.b16 %v524, %v523
    %v585 = vpack.c.b16 %v526, %v525
    %v586 = vpack.c.b16 %v528, %v527
    %v587 = vpack.c.b16 %v530, %v529
    %v588 = vpack.c.b16 %v532, %v531
    %v589 = vpack.c.b16 %v534, %v533
    %v590 = vpack.c.b16 %v536, %v535
    %v591 = vpack.c.b16 %v538, %v537
    %v592 = vpack.c.b16 %v540, %v539
    %v593 = vpack.c.b16 %v542, %v541
    %v594 = vpack.c.b16 %v544, %v543
    %v595 = vpack.c.b16 %v546, %v545
    %v596 = vpack.c.b16 %v548, %v547
    %v597 = vpack.c.b16 %v550, %v549
    %v598 = vpack.c.b16 %v552, %v551
    %v599 = vpack.c.b16 %v554, %v553
    %v600 = vpack.c.b16 %v556, %v555
    %v601 = vpack.c.b16 %v558, %v557
    %v602 = vpack.c.b16 %v560, %v559
    %v603 = vpack.c.b16 %v562, %v561
    %v604 = vpack.c.b16 %v564, %v563
    %v605 = vpack.c.b16 %v566, %v565
    %v606 = vpack.c.b16 %v568, %v567
    %v607 = vpack.c.b16 %v570, %v569
    %v608 = vpack.c.b16 %v572, %v571
    %v609 = vpack.c.b16 %v574, %v573
    %v610 = vpack.c.b16 %v576, %v575
    %v611 = vpack.c.b16 %v578, %v577
    %v612 = vpack.c.b16 %v580, %v579
    %645 = vmatprep.subr.bf16.mxu0 0
    %646 = vmatpush1.bf16.msra.mxu0 %v581
    %647 = vmatprep.subr.bf16.mxu0 0
    %648 = vmatpush1.bf16.msra.mxu0 %v582
    %649 = vmatprep.subr.bf16.mxu0 0
    %650 = vmatpush1.bf16.msra.mxu0 %v583
    %651 = vmatprep.subr.bf16.mxu0 0
    %652 = vmatpush1.bf16.msra.mxu0 %v584
    %653 = vmatprep.subr.bf16.mxu0 0
    %654 = vmatpush1.bf16.msra.mxu0 %v585
    %655 = vmatprep.subr.bf16.mxu0 0
    %656 = vmatpush1.bf16.msra.mxu0 %v586
    %657 = vmatprep.subr.bf16.mxu0 0
    %658 = vmatpush1.bf16.msra.mxu0 %v587
    %659 = vmatprep.subr.bf16.mxu0 0
    %660 = vmatpush1.bf16.msra.mxu0 %v588
    %661 = vmatprep.subr.bf16.mxu0 0
    %662 = vmatpush1.bf16.msra.mxu0 %v589
    %663 = vmatprep.subr.bf16.mxu0 0
    %664 = vmatpush1.bf16.msra.mxu0 %v590
    %665 = vmatprep.subr.bf16.mxu0 0
    %666 = vmatpush1.bf16.msra.mxu0 %v591
    %667 = vmatprep.subr.bf16.mxu0 0
    %668 = vmatpush1.bf16.msra.mxu0 %v592
    %669 = vmatprep.subr.bf16.mxu0 0
    %670 = vmatpush1.bf16.msra.mxu0 %v593
    %671 = vmatprep.subr.bf16.mxu0 0
    %672 = vmatpush1.bf16.msra.mxu0 %v594
    %673 = vmatprep.subr.bf16.mxu0 0
    %674 = vmatpush1.bf16.msra.mxu0 %v595
    %675 = vmatprep.subr.bf16.mxu0 0
    %676 = vmatpush1.bf16.msra.mxu0 %v596
    %677 = vmatprep.mubr.bf16.mxu0 %v386
    %678 = vmatmul.mubr.bf16.gmra.mrb[0].mxu0 %v385
    %v679 = vpop.f32.mrb[0].mxu0
    %v680 = vadd.f32 0.0, %v679
    %v681 = vpop.f32.mrb[0].mxu0
    %v682 = vpop.f32.mrb[0].mxu0
    %v683 = vpop.f32.mrb[0].mxu0
    %684 = vdwg.mxu0
    %685 = vmatprep.subr.bf16.mxu0 0
    %686 = vmatpush1.bf16.msra.mxu0 %v597
    %687 = vmatprep.subr.bf16.mxu0 0
    %688 = vmatpush1.bf16.msra.mxu0 %v598
    %689 = vmatprep.subr.bf16.mxu0 0
    %690 = vmatpush1.bf16.msra.mxu0 %v599
    %691 = vmatprep.subr.bf16.mxu0 0
    %692 = vmatpush1.bf16.msra.mxu0 %v600
    %693 = vmatprep.subr.bf16.mxu0 0
    %694 = vmatpush1.bf16.msra.mxu0 %v601
    %695 = vmatprep.subr.bf16.mxu0 0
    %696 = vmatpush1.bf16.msra.mxu0 %v602
    %697 = vmatprep.subr.bf16.mxu0 0
    %698 = vmatpush1.bf16.msra.mxu0 %v603
    %699 = vmatprep.subr.bf16.mxu0 0
    %700 = vmatpush1.bf16.msra.mxu0 %v604
    %701 = vmatprep.subr.bf16.mxu0 0
    %702 = vmatpush1.bf16.msra.mxu0 %v605
    %703 = vmatprep.subr.bf16.mxu0 0
    %704 = vmatpush1.bf16.msra.mxu0 %v606
    %705 = vmatprep.subr.bf16.mxu0 0
    %706 = vmatpush1.bf16.msra.mxu0 %v607
    %707 = vmatprep.subr.bf16.mxu0 0
    %708 = vmatpush1.bf16.msra.mxu0 %v608
    %709 = vmatprep.subr.bf16.mxu0 0
    %710 = vmatpush1.bf16.msra.mxu0 %v609
    %711 = vmatprep.subr.bf16.mxu0 0
    %712 = vmatpush1.bf16.msra.mxu0 %v610
    %713 = vmatprep.subr.bf16.mxu0 0
    %714 = vmatpush1.bf16.msra.mxu0 %v611
    %715 = vmatprep.subr.bf16.mxu0 0
    %716 = vmatpush1.bf16.msra.mxu0 %v612
    %717 = vmatprep.mubr.bf16.mxu0 %v388
    %718 = vmatmul.mubr.bf16.gmra.mrb[0].mxu0 %v387
    %v719 = vpop.f32.mrb[0].mxu0
    %v720 = vadd.f32 %v680, %v719
    %v721 = vpop.f32.mrb[0].mxu0
    %v722 = vpop.f32.mrb[0].mxu0
    %v723 = vpop.f32.mrb[0].mxu0
    %724 = vdwg.mxu0
    %v725 = vadd.f32 %v384, %v720
    %726 = vst [vmem:[#allocation2] sm:$0xf] %v725
    // Predicated region
    $region38: #{tpu_custom_call.1} parent=1 // pred_check
      %p727 = pneg %p61
    $region39: #{tpu_custom_call.1} parent=1 // pred_check_branch
      %729 = sbr.rel (%p727) target = $region41
    $region40: #{tpu_custom_call.1} parent=1 // pred_region
      %v730 = vld [vmem:[#allocation2] sm:$0xf]
      %v731 = vld [vmem:[%s4] sm:$0x1]
      %v733 = vlaneseq
      %v734 = vshrl.u32 %v733, 7
      %v735 = vsub.s32 0, %v734
      %v736 = vrot.slane %v731, %v735
      %v738 = vadd.f32 %v730, %v736
      %739 = vst [vmem:[#allocation9] sm:$0xf] %v738
    $region41: #{tpu_custom_call.1} parent=1 // pred_fallthru
      _
    // Predicated region
    $region42: #{tpu_custom_call.1} parent=1 // pred_check
      _
    $region43: #{tpu_custom_call.1} parent=1 // pred_check_branch
      %741 = sbr.rel (0) target = $region45
    $region44: #{tpu_custom_call.1} parent=1 // pred_region
      %s743 = ssub.s32 64, 64
      %744 = vsyncadd [#allocation5], %s743
      %s746 = sshll.u32 [#allocation9], 4
      %s747 = int_to_ptr.vmem [resolvable:$true] %s746
      %749 = dma.vmem_to_hbm [thread:$0]  %s747, 64, %s5, [#allocation5]
    $region45: #{tpu_custom_call.1} parent=1 // pred_fallthru
      _
    // Predicated region
    $region46: #{tpu_custom_call.1} parent=1 // pred_check
      _
    $region47: #{tpu_custom_call.1} parent=1 // pred_check_branch
      %751 = sbr.rel (0) target = $region49
    $region48: #{tpu_custom_call.1} parent=1 // pred_region
      %752 = dma.done [#allocation5], 64
    $region49: #{tpu_custom_call.1} parent=1 // pred_fallthru
      _
    %753 = vsyncpa [#allocation4], 1
    %754 = vsyncpa [#allocation7], 1
    %755 = vsyncpa [#allocation5], 1

</llo_original>
